<compile_context>
chip_gen: v7x
topology: tpu7x:2x2x1
jax: 0.10.0
libtpu: 0.0.40
codegen_flags: <defaults>
</compile_context>

<pallas_src>
import functools
import math

import jax
import jax.numpy as jnp
from jax import lax
from jax.experimental import pallas as pl
from jax.experimental.pallas import tpu as pltpu

NUM_HIDDEN = 32
NUM_HEADS = 4
LN_EPS = 1e-5


def _attention_kernel(xs_ref, w_ref, vec_ref, out_ref, attn_ref, *, B, Sk, Sq, H, h):
    d = H // h
    inv_sqrt_d = 1.0 / math.sqrt(d)
    n_mem = B * Sk
    n_tot = B * Sk + B * Sq

    xs = xs_ref[...]                                   # (B*Sk + B*Sq, H)  [mem ; dec]
    w_qkv = w_ref[:H, :]                               # (H, 3H)  [Wk^T | Wv^T | Wq^T]
    w_fin = w_ref[H:, :H]                              # (2H, H)  Wf^T
    vecs = vec_ref[...]                                # (3, H)   [bias ; gamma ; beta]

    dec2 = xs[n_mem:, :]                               # (B*Sq, H)

    # One MXU push for all three projections; cross terms (mem@Wq^T, dec@Wk^T,
    # dec@Wv^T) land in never-read blocks of `proj`.
    proj = jnp.dot(xs, w_qkv, preferred_element_type=jnp.float32)   # (n_tot, 3H)

    # Head-major (h*B, S, d) tensors (same ordering as torch permute(2,0,1,3)),
    # built with static lane slices + a single leading-axis concat.
    def head_major(r0, r1, c0, S):
        return jnp.concatenate(
            [proj[r0:r1, c0 + i * d:c0 + (i + 1) * d].reshape(B, S, d)
             for i in range(h)],
            axis=0)

    kh = head_major(0, n_mem, 0, Sk)                   # (h*B, Sk, d)
    vh = head_major(0, n_mem, H, Sk)                   # (h*B, Sk, d)
    qh = head_major(n_mem, n_tot, 2 * H, Sq)           # (h*B, Sq, d)

    # Batched over all h*B rows: one score matmul, one softmax, one store, one ctx.
    s = jnp.einsum('nqd,nkd->nqk', qh, kh,
                   preferred_element_type=jnp.float32) * inv_sqrt_d
    m = jnp.max(s, axis=-1, keepdims=True)
    e = jnp.exp(s - m)
    p = e / jnp.sum(e, axis=-1, keepdims=True)         # rows sum exactly to 1
    attn_ref[...] = p.astype(attn_ref.dtype)           # single store (head-major)

    ctx = jnp.einsum('nqk,nkd->nqd', p, vh,
                     preferred_element_type=jnp.float32)            # (h*B, Sq, d)

    # concat([decoder_input, ctx with heads back on the feature axis]) @ Wf^T:
    # ONE matmul instead of two (or four per-head) pushes.
    cat = jnp.concatenate(
        [dec2] + [ctx[i * B:(i + 1) * B].reshape(B * Sq, d) for i in range(h)],
        axis=1)                                        # (B*Sq, 2H)
    res = jnp.dot(cat, w_fin, preferred_element_type=jnp.float32)   # (B*Sq, H)

    res = res + vecs[0:1, :] + dec2                    # final_linear bias + residual
    mu = jnp.mean(res, axis=-1, keepdims=True)
    var = jnp.mean((res - mu) ** 2, axis=-1, keepdims=True)
    normed = (res - mu) * lax.rsqrt(var + LN_EPS)
    out = normed * vecs[1:2, :] + vecs[2:3, :]
    out_ref[...] = out.reshape(B, Sq, H).astype(out_ref.dtype)


def attention_forward(memory, decoder_input, wk, wv, wq, wf, bf, gamma, beta,
                      h=NUM_HEADS):
    """Attention.forward(memory, decoder_input, mask=None, query_mask=None), eval mode."""
    B, Sk, H = memory.shape
    Sq = decoder_input.shape[1]
    assert H % h == 0 and (h * B) % 4 == 0
    f32 = jnp.float32

    # Pack the 9 logical inputs into 3 arrays (3 DMAs / VMEM windows).
    xs = jnp.concatenate([memory.reshape(B * Sk, H),
                          decoder_input.reshape(B * Sq, H)], axis=0).astype(f32)
    w_qkv = jnp.concatenate([wk.T, wv.T, wq.T], axis=1)              # (H, 3H)
    w_fin = jnp.pad(wf.T, ((0, 0), (0, 2 * H)))                      # (2H, 3H), 0-padded
    w_slab = jnp.concatenate([w_qkv, w_fin], axis=0).astype(f32)     # (3H, 3H)
    vec_slab = jnp.stack([bf, gamma, beta], axis=0).astype(f32)      # (3, H)

    kernel = functools.partial(_attention_kernel, B=B, Sk=Sk, Sq=Sq, H=H, h=h)
    vmem = pl.BlockSpec(memory_space=pltpu.MemorySpace.VMEM)

    out, attn_hm = pl.pallas_call(
        kernel,
        out_shape=(
            jax.ShapeDtypeStruct((B, Sq, H), memory.dtype),
            jax.ShapeDtypeStruct((h * B, Sq, Sk), jnp.float32),
        ),
        in_specs=[vmem, vmem, vmem],
        out_specs=(vmem, vmem),
    )(xs, w_slab, vec_slab)

    # Match torch: attn is (h*B, Sq, Sk) head-major, then .view(h*B // 4, 4, Sq, Sk).
    attns = attn_hm.reshape((h * B) // 4, 4, Sq, Sk)
    return out, attns


def _reference_forward(memory, dec, wk, wv, wq, wf, bf, gamma, beta, h):
    """Pure-JAX transcription of the PyTorch forward (eval mode, no masks)."""
    B, Sk, H = memory.shape
    Sq = dec.shape[1]
    d = H // h
    hp = jax.lax.Precision.HIGHEST

    k = jnp.matmul(memory, wk.T, precision=hp)
    v = jnp.matmul(memory, wv.T, precision=hp)
    q = jnp.matmul(dec, wq.T, precision=hp)

    def split_heads(x, S):
        return jnp.transpose(x.reshape(B, S, h, d), (2, 0, 1, 3)).reshape(h * B, S, d)

    kh, vh, qh = split_heads(k, Sk), split_heads(v, Sk), split_heads(q, Sq)
    attn = jnp.einsum('nqd,nkd->nqk', qh, kh, precision=hp) / math.sqrt(d)
    attn = jax.nn.softmax(attn, axis=-1)
    attns = attn.reshape((h * B) // 4, 4, Sq, Sk)

    res = jnp.einsum('nqk,nkd->nqd', attn, vh, precision=hp)
    res = jnp.transpose(res.reshape(h, B, Sq, d), (1, 2, 0, 3)).reshape(B, Sq, H)
    res = jnp.matmul(jnp.concatenate([dec, res], axis=-1), wf.T, precision=hp) + bf
    res = res + dec
    mu = res.mean(-1, keepdims=True)
    var = ((res - mu) ** 2).mean(-1, keepdims=True)
    out = (res - mu) / jnp.sqrt(var + LN_EPS) * gamma + beta
    return out, attns


if __name__ == "__main__":
    B, S, H, h = 2, 8, NUM_HIDDEN, NUM_HEADS

    key = jax.random.PRNGKey(0)
    keys = jax.random.split(key, 7)
    memory = jax.random.normal(keys[0], (B, S, H), jnp.float32)
    decoder_input = jax.random.normal(keys[1], (B, S, H), jnp.float32)

    def xavier_uniform(k, shape):
        fan_out, fan_in = shape
        bound = math.sqrt(6.0 / (fan_in + fan_out))
        return jax.random.uniform(k, shape, jnp.float32, -bound, bound)

    wk = xavier_uniform(keys[2], (H, H))
    wv = xavier_uniform(keys[3], (H, H))
    wq = xavier_uniform(keys[4], (H, H))
    wf = xavier_uniform(keys[5], (H, 2 * H))
    bf = jax.random.uniform(keys[6], (H,), jnp.float32,
                            -1.0 / math.sqrt(2 * H), 1.0 / math.sqrt(2 * H))
    gamma = jnp.ones((H,), jnp.float32)   # LayerNorm default init
    beta = jnp.zeros((H,), jnp.float32)

    out, attns = attention_forward(memory, decoder_input, wk, wv, wq, wf, bf,
                                   gamma, beta, h=h)
    out, attns = jax.block_until_ready((out, attns))

    ref_out, ref_attns = _reference_forward(memory, decoder_input, wk, wv, wq,
                                            wf, bf, gamma, beta, h)

    assert out.shape == (B, S, H), out.shape
    assert attns.shape == ((h * B) // 4, 4, S, S), attns.shape
    err_out = float(jnp.max(jnp.abs(out - ref_out)))
    err_attn = float(jnp.max(jnp.abs(attns - ref_attns)))
    assert jnp.allclose(out, ref_out, atol=2e-3, rtol=2e-3), err_out
    assert jnp.allclose(attns, ref_attns, atol=2e-3, rtol=2e-3), err_attn

    print("KERNEL_OK")
</pallas_src>

<mosaic_0001>
module attributes {stable_mosaic.version = 11 : i64} {
  func.func @_attention_kernel(%arg0: memref<32x32xf32, #tpu.memory_space<vmem>>, %arg1: memref<96x96xf32, #tpu.memory_space<vmem>>, %arg2: memref<3x32xf32, #tpu.memory_space<vmem>>, %arg3: memref<2x8x32xf32, #tpu.memory_space<vmem>>, %arg4: memref<8x8x8xf32, #tpu.memory_space<vmem>>) attributes {dimension_semantics = [], scalar_prefetch = 0 : i64, scratch_operands = 0 : i64, tpu.core_type = #tpu.core_type<tc>} {
    %c0 = arith.constant 0 : index
    %c0_0 = arith.constant 0 : index
    %0 = vector.load %arg0[%c0, %c0_0] : memref<32x32xf32, #tpu.memory_space<vmem>>, vector<32x32xf32>
    %c0_1 = arith.constant 0 : index
    %c0_2 = arith.constant 0 : index
    %1 = vector.load %arg1[%c0_1, %c0_2] : memref<96x96xf32, #tpu.memory_space<vmem>>, vector<32x96xf32>
    %c32 = arith.constant 32 : index
    %c0_3 = arith.constant 0 : index
    %2 = vector.load %arg1[%c32, %c0_3] : memref<96x96xf32, #tpu.memory_space<vmem>>, vector<64x32xf32>
    %c0_4 = arith.constant 0 : index
    %c0_5 = arith.constant 0 : index
    %3 = vector.load %arg2[%c0_4, %c0_5] : memref<3x32xf32, #tpu.memory_space<vmem>>, vector<3x32xf32>
    %4 = vector.extract_strided_slice %0 {offsets = [16, 0], sizes = [16, 32], strides = [1, 1]} : vector<32x32xf32> to vector<16x32xf32>
    %cst = arith.constant dense<0.000000e+00> : vector<32x96xf32>
    %5 = tpu.matmul %0, %1, %cst {dimension_numbers = #tpu.dot_dimension_numbers<[1], [0], [0], [1], [0, 0, 1, 1], [], []>} : vector<32x32xf32>, vector<32x96xf32>, vector<32x96xf32> -> vector<32x96xf32>
    %6 = vector.extract_strided_slice %5 {offsets = [0, 0], sizes = [16, 8], strides = [1, 1]} : vector<32x96xf32> to vector<16x8xf32>
    %7 = vector.shape_cast %6 : vector<16x8xf32> to vector<2x8x8xf32>
    %8 = vector.extract_strided_slice %5 {offsets = [0, 8], sizes = [16, 8], strides = [1, 1]} : vector<32x96xf32> to vector<16x8xf32>
    %9 = vector.shape_cast %8 : vector<16x8xf32> to vector<2x8x8xf32>
    %10 = vector.extract_strided_slice %5 {offsets = [0, 16], sizes = [16, 8], strides = [1, 1]} : vector<32x96xf32> to vector<16x8xf32>
    %11 = vector.shape_cast %10 : vector<16x8xf32> to vector<2x8x8xf32>
    %12 = vector.extract_strided_slice %5 {offsets = [0, 24], sizes = [16, 8], strides = [1, 1]} : vector<32x96xf32> to vector<16x8xf32>
    %13 = vector.shape_cast %12 : vector<16x8xf32> to vector<2x8x8xf32>
    %14 = tpu.concatenate %7, %9, %11, %13 in 0 : vector<2x8x8xf32>, vector<2x8x8xf32>, vector<2x8x8xf32>, vector<2x8x8xf32> -> vector<8x8x8xf32>
    %15 = vector.extract_strided_slice %5 {offsets = [0, 32], sizes = [16, 8], strides = [1, 1]} : vector<32x96xf32> to vector<16x8xf32>
    %16 = vector.shape_cast %15 : vector<16x8xf32> to vector<2x8x8xf32>
    %17 = vector.extract_strided_slice %5 {offsets = [0, 40], sizes = [16, 8], strides = [1, 1]} : vector<32x96xf32> to vector<16x8xf32>
    %18 = vector.shape_cast %17 : vector<16x8xf32> to vector<2x8x8xf32>
    %19 = vector.extract_strided_slice %5 {offsets = [0, 48], sizes = [16, 8], strides = [1, 1]} : vector<32x96xf32> to vector<16x8xf32>
    %20 = vector.shape_cast %19 : vector<16x8xf32> to vector<2x8x8xf32>
    %21 = vector.extract_strided_slice %5 {offsets = [0, 56], sizes = [16, 8], strides = [1, 1]} : vector<32x96xf32> to vector<16x8xf32>
    %22 = vector.shape_cast %21 : vector<16x8xf32> to vector<2x8x8xf32>
    %23 = tpu.concatenate %16, %18, %20, %22 in 0 : vector<2x8x8xf32>, vector<2x8x8xf32>, vector<2x8x8xf32>, vector<2x8x8xf32> -> vector<8x8x8xf32>
    %24 = vector.extract_strided_slice %5 {offsets = [16, 64], sizes = [16, 8], strides = [1, 1]} : vector<32x96xf32> to vector<16x8xf32>
    %25 = vector.shape_cast %24 : vector<16x8xf32> to vector<2x8x8xf32>
    %26 = vector.extract_strided_slice %5 {offsets = [16, 72], sizes = [16, 8], strides = [1, 1]} : vector<32x96xf32> to vector<16x8xf32>
    %27 = vector.shape_cast %26 : vector<16x8xf32> to vector<2x8x8xf32>
    %28 = vector.extract_strided_slice %5 {offsets = [16, 80], sizes = [16, 8], strides = [1, 1]} : vector<32x96xf32> to vector<16x8xf32>
    %29 = vector.shape_cast %28 : vector<16x8xf32> to vector<2x8x8xf32>
    %30 = vector.extract_strided_slice %5 {offsets = [16, 88], sizes = [16, 8], strides = [1, 1]} : vector<32x96xf32> to vector<16x8xf32>
    %31 = vector.shape_cast %30 : vector<16x8xf32> to vector<2x8x8xf32>
    %32 = tpu.concatenate %25, %27, %29, %31 in 0 : vector<2x8x8xf32>, vector<2x8x8xf32>, vector<2x8x8xf32>, vector<2x8x8xf32> -> vector<8x8x8xf32>
    "tpu.trace_start"() <{level = 10 : i32, message = "nqd,nkd->nqk"}> : () -> ()
    %cst_6 = arith.constant dense<0.000000e+00> : vector<8x8x8xf32>
    %33 = tpu.matmul %32, %14, %cst_6 {dimension_numbers = #tpu.dot_dimension_numbers<[2], [2], [1], [1], [0, 0, 0, 1, 1, 1], [0], [0]>} : vector<8x8x8xf32>, vector<8x8x8xf32>, vector<8x8x8xf32> -> vector<8x8x8xf32>
    "tpu.trace_stop"() : () -> ()
    %cst_7 = arith.constant 0.353553385 : f32
    %34 = vector.broadcast %cst_7 : f32 to vector<8x8x8xf32>
    %35 = arith.mulf %33, %34 : vector<8x8x8xf32>
    %cst_8 = arith.constant dense<0xFF800000> : vector<8x8xf32>
    %36 = vector.multi_reduction <maximumf>, %35, %cst_8 [2] : vector<8x8x8xf32> to vector<8x8xf32>
    %37 = vector.shape_cast %36 : vector<8x8xf32> to vector<8x8x1xf32>
    %38 = vector.broadcast %37 : vector<8x8x1xf32> to vector<8x8x8xf32>
    %39 = arith.subf %35, %38 : vector<8x8x8xf32>
    %40 = math.exp %39 : vector<8x8x8xf32>
    %cst_9 = arith.constant dense<0.000000e+00> : vector<8x8xf32>
    %41 = vector.multi_reduction <add>, %40, %cst_9 [2] : vector<8x8x8xf32> to vector<8x8xf32>
    %42 = vector.shape_cast %41 : vector<8x8xf32> to vector<8x8x1xf32>
    %43 = vector.broadcast %42 : vector<8x8x1xf32> to vector<8x8x8xf32>
    %44 = arith.divf %40, %43 : vector<8x8x8xf32>
    %c0_10 = arith.constant 0 : index
    %c0_11 = arith.constant 0 : index
    %c0_12 = arith.constant 0 : index
    %45 = vector.load %arg4[%c0_10, %c0_11, %c0_12] : memref<8x8x8xf32, #tpu.memory_space<vmem>>, vector<8x8x8xf32>
    tpu.vector_store %arg4[%c0_10, %c0_11, %c0_12], %44 {strides = array<i32>} : memref<8x8x8xf32, #tpu.memory_space<vmem>>, vector<8x8x8xf32>,
    "tpu.trace_start"() <{level = 10 : i32, message = "nqk,nkd->nqd"}> : () -> ()
    %cst_13 = arith.constant dense<0.000000e+00> : vector<8x8x8xf32>
    %46 = tpu.matmul %44, %23, %cst_13 {dimension_numbers = #tpu.dot_dimension_numbers<[2], [1], [1], [2], [0, 0, 0, 1, 1, 2], [0], [0]>} : vector<8x8x8xf32>, vector<8x8x8xf32>, vector<8x8x8xf32> -> vector<8x8x8xf32>
    "tpu.trace_stop"() : () -> ()
    %47 = vector.extract_strided_slice %46 {offsets = [0, 0, 0], sizes = [2, 8, 8], strides = [1, 1, 1]} : vector<8x8x8xf32> to vector<2x8x8xf32>
    %48 = vector.shape_cast %47 : vector<2x8x8xf32> to vector<16x8xf32>
    %49 = vector.extract_strided_slice %46 {offsets = [2, 0, 0], sizes = [2, 8, 8], strides = [1, 1, 1]} : vector<8x8x8xf32> to vector<2x8x8xf32>
    %50 = vector.shape_cast %49 : vector<2x8x8xf32> to vector<16x8xf32>
    %51 = vector.extract_strided_slice %46 {offsets = [4, 0, 0], sizes = [2, 8, 8], strides = [1, 1, 1]} : vector<8x8x8xf32> to vector<2x8x8xf32>
    %52 = vector.shape_cast %51 : vector<2x8x8xf32> to vector<16x8xf32>
    %53 = vector.extract_strided_slice %46 {offsets = [6, 0, 0], sizes = [2, 8, 8], strides = [1, 1, 1]} : vector<8x8x8xf32> to vector<2x8x8xf32>
    %54 = vector.shape_cast %53 : vector<2x8x8xf32> to vector<16x8xf32>
    %55 = tpu.concatenate %4, %48, %50, %52, %54 in 1 : vector<16x32xf32>, vector<16x8xf32>, vector<16x8xf32>, vector<16x8xf32>, vector<16x8xf32> -> vector<16x64xf32>
    %cst_14 = arith.constant dense<0.000000e+00> : vector<16x32xf32>
    %56 = tpu.matmul %55, %2, %cst_14 {dimension_numbers = #tpu.dot_dimension_numbers<[1], [0], [0], [1], [0, 0, 1, 1], [], []>} : vector<16x64xf32>, vector<64x32xf32>, vector<16x32xf32> -> vector<16x32xf32>
    %57 = vector.extract_strided_slice %3 {offsets = [0, 0], sizes = [1, 32], strides = [1, 1]} : vector<3x32xf32> to vector<1x32xf32>
    %58 = vector.broadcast %57 : vector<1x32xf32> to vector<16x32xf32>
    %59 = arith.addf %56, %58 : vector<16x32xf32>
    %60 = arith.addf %59, %4 : vector<16x32xf32>
    %cst_15 = arith.constant dense<0.000000e+00> : vector<16xf32>
    %61 = vector.multi_reduction <add>, %60, %cst_15 [1] : vector<16x32xf32> to vector<16xf32>
    %62 = vector.shape_cast %61 : vector<16xf32> to vector<16x1xf32>
    %cst_16 = arith.constant 3.200000e+01 : f32
    %63 = vector.broadcast %cst_16 : f32 to vector<16x1xf32>
    %64 = arith.divf %62, %63 : vector<16x1xf32>
    %65 = vector.broadcast %64 : vector<16x1xf32> to vector<16x32xf32>
    %66 = arith.subf %60, %65 : vector<16x32xf32>
    %67 = arith.mulf %66, %66 : vector<16x32xf32>
    %cst_17 = arith.constant dense<0.000000e+00> : vector<16xf32>
    %68 = vector.multi_reduction <add>, %67, %cst_17 [1] : vector<16x32xf32> to vector<16xf32>
    %69 = vector.shape_cast %68 : vector<16xf32> to vector<16x1xf32>
    %cst_18 = arith.constant 3.200000e+01 : f32
    %70 = vector.broadcast %cst_18 : f32 to vector<16x1xf32>
    %71 = arith.divf %69, %70 : vector<16x1xf32>
    %72 = vector.broadcast %64 : vector<16x1xf32> to vector<16x32xf32>
    %73 = arith.subf %60, %72 : vector<16x32xf32>
    %cst_19 = arith.constant 9.99999974E-6 : f32
    %74 = vector.broadcast %cst_19 : f32 to vector<16x1xf32>
    %75 = arith.addf %71, %74 : vector<16x1xf32>
    %76 = math.rsqrt %75 : vector<16x1xf32>
    %77 = vector.broadcast %76 : vector<16x1xf32> to vector<16x32xf32>
    %78 = arith.mulf %73, %77 : vector<16x32xf32>
    %79 = vector.extract_strided_slice %3 {offsets = [1, 0], sizes = [1, 32], strides = [1, 1]} : vector<3x32xf32> to vector<1x32xf32>
    %80 = vector.broadcast %79 : vector<1x32xf32> to vector<16x32xf32>
    %81 = arith.mulf %78, %80 : vector<16x32xf32>
    %82 = vector.extract_strided_slice %3 {offsets = [2, 0], sizes = [1, 32], strides = [1, 1]} : vector<3x32xf32> to vector<1x32xf32>
    %83 = vector.broadcast %82 : vector<1x32xf32> to vector<16x32xf32>
    %84 = arith.addf %81, %83 : vector<16x32xf32>
    %85 = vector.shape_cast %84 : vector<16x32xf32> to vector<2x8x32xf32>
    %c0_20 = arith.constant 0 : index
    %c0_21 = arith.constant 0 : index
    %c0_22 = arith.constant 0 : index
    %86 = vector.load %arg3[%c0_20, %c0_21, %c0_22] : memref<2x8x32xf32, #tpu.memory_space<vmem>>, vector<2x8x32xf32>
    tpu.vector_store %arg3[%c0_20, %c0_21, %c0_22], %85 {strides = array<i32>} : memref<2x8x32xf32, #tpu.memory_space<vmem>>, vector<2x8x32xf32>,
    return
  }
}

</mosaic_0001>

<llo_original>
// kernel: tpu_custom_call.1
$region0: #{tpu_custom_call.1}
  #allocation0 [shape = 'u32[]', space=smem, size = 0x4, offset = 0x4, fixed_abs, tag = 'smem constant byte address 0x4 - core index']
  #allocation1 [shape = 'u32[144,128]{1,0:T(1,128)}', space=vmem, size = 0x12000, scoped, tag = 'internal scratch']
  %s0 = inlined_call_operand.hbm [shape: f32[32,32], index: 0, kind: input, shape index: {}]
  %s1 = inlined_call_operand.hbm [shape: f32[96,96], index: 1, kind: input, shape index: {}]
  %s2 = inlined_call_operand.vmem [shape: f32[3,32], index: 2, kind: input, shape index: {}]
  %s3 = inlined_call_operand.hbm [shape: f32[2,8,32], index: 3, kind: output, shape index: {0}]
  %s4 = inlined_call_operand.hbm [shape: f32[8,8,8], index: 4, kind: output, shape index: {1}]
  %5 = xla_tuple %s3, %s4
  %s6 = sld [smem:[#allocation0]]
  $region38: #{tpu_custom_call.1} parent=0
    _
  %s8 = ssub.s32 1, %s6
  %s9 = scalar_select 0, %s8, %s6
  $region1: #{tpu_custom_call.1} parent=0
    #allocation2 [shape = 'u8[16384]{0}', space=vmem, size = 0x4000, scoped, tag = 'input window, operand 0, single buffered']
    #allocation3 [shape = 's32[1]{0}', space=sflag, size = 0x4, scoped, tag = 'scoped memory for tpu_custom_call.1']
    #allocation4 [shape = 's32[1]{0}', space=sflag, size = 0x4, scoped, tag = 'scoped memory for tpu_custom_call.1']
    #allocation5 [shape = 'u8[49152]{0}', space=vmem, size = 0xc000, scoped, tag = 'input window, operand 1, single buffered']
    #allocation6 [shape = 's32[1]{0}', space=sflag, size = 0x4, scoped, tag = 'scoped memory for tpu_custom_call.1']
    #allocation7 [shape = 'u8[8192]{0}', space=vmem, size = 0x2000, scoped, tag = 'output window, operand 0, single buffered']
    #allocation8 [shape = 'u8[32768]{0}', space=vmem, size = 0x8000, scoped, tag = 'output window, operand 1, single buffered']
    #allocation9 [shape = 's32[1]{0}', space=sflag, size = 0x4, scoped, tag = 'scoped memory for tpu_custom_call.1']
    %10 = vsyncpa [#allocation3], 0
    %11 = vsyncpa [#allocation6], 0
    %12 = vsyncpa [#allocation4], 0
    %13 = vsyncpa [#allocation9], 0
    // Predicated region
    $region2: #{tpu_custom_call.1} parent=1 // pred_check
      _
    $region3: #{tpu_custom_call.1} parent=1 // pred_check_branch
      %15 = sbr.rel (0) target = $region5
    $region4: #{tpu_custom_call.1} parent=1 // pred_region
      %s17 = ssub.s32 512, 512
      %18 = vsyncadd [#allocation3], %s17
      %s19 = sshll.u32 [#allocation2], 4
      %s20 = int_to_ptr.vmem [resolvable:$true] %s19
      %25 = dma.hbm_to_vmem [thread:$0]  %s0, 512, %s20, [#allocation3], 128, 128, 8
    $region5: #{tpu_custom_call.1} parent=1 // pred_fallthru
      _
    // Predicated region
    $region6: #{tpu_custom_call.1} parent=1 // pred_check
      _
    $region7: #{tpu_custom_call.1} parent=1 // pred_check_branch
      %27 = sbr.rel (0) target = $region9
    $region8: #{tpu_custom_call.1} parent=1 // pred_region
      %s29 = ssub.s32 1536, 1536
      %30 = vsyncadd [#allocation6], %s29
      %s31 = sshll.u32 [#allocation5], 4
      %s32 = int_to_ptr.vmem [resolvable:$true] %s31
      %37 = dma.hbm_to_vmem [thread:$0]  %s1, 1536, %s32, [#allocation6], 128, 128, 8
    $region9: #{tpu_custom_call.1} parent=1 // pred_fallthru
      _
    // Predicated region
    $region10: #{tpu_custom_call.1} parent=1 // pred_check
      _
    $region11: #{tpu_custom_call.1} parent=1 // pred_check_branch
      %39 = sbr.rel (0) target = $region13
    $region12: #{tpu_custom_call.1} parent=1 // pred_region
      _
    $region13: #{tpu_custom_call.1} parent=1 // pred_fallthru
      _
    // Predicated region
    $region14: #{tpu_custom_call.1} parent=1 // pred_check
      _
    $region15: #{tpu_custom_call.1} parent=1 // pred_check_branch
      %41 = sbr.rel (0) target = $region17
    $region16: #{tpu_custom_call.1} parent=1 // pred_region
      %42 = dma.done [#allocation3], 512
    $region17: #{tpu_custom_call.1} parent=1 // pred_fallthru
      _
    // Predicated region
    $region18: #{tpu_custom_call.1} parent=1 // pred_check
      _
    $region19: #{tpu_custom_call.1} parent=1 // pred_check_branch
      %44 = sbr.rel (0) target = $region21
    $region20: #{tpu_custom_call.1} parent=1 // pred_region
      %45 = dma.done [#allocation6], 1536
    $region21: #{tpu_custom_call.1} parent=1 // pred_fallthru
      _
    %v46 = vld [vmem:[#allocation2] sm:$0xff]
    %v47 = vld [vmem:[#allocation2 + $0x8] sm:$0xff]
    %v48 = vld [vmem:[#allocation2 + $0x10] sm:$0xff]
    %v49 = vld [vmem:[#allocation2 + $0x18] sm:$0xff]
    %v50 = vld [vmem:[#allocation5] sm:$0xff]
    %v51 = vld [vmem:[#allocation5 + $0x8] sm:$0xff]
    %v52 = vld [vmem:[#allocation5 + $0x10] sm:$0xff]
    %v53 = vld [vmem:[#allocation5 + $0x18] sm:$0xff]
    %v54 = vld [vmem:[#allocation5 + $0x20] sm:$0xff]
    %v55 = vld [vmem:[#allocation5 + $0x28] sm:$0xff]
    %v56 = vld [vmem:[#allocation5 + $0x30] sm:$0xff]
    %v57 = vld [vmem:[#allocation5 + $0x38] sm:$0xff]
    %v58 = vld [vmem:[#allocation5 + $0x40] sm:$0xff]
    %v59 = vld [vmem:[#allocation5 + $0x48] sm:$0xff]
    %v60 = vld [vmem:[#allocation5 + $0x50] sm:$0xff]
    %v61 = vld [vmem:[#allocation5 + $0x58] sm:$0xff]
    %v62 = vld [vmem:[%s2] sm:$0x7]
    %vm63 = vcmask 261120
    %v65 = vsel %vm63, %v46, 0
    %v68 = vsel %vm63, %v47, 0
    %v71 = vsel %vm63, %v48, 0
    %v74 = vsel %vm63, %v49, 0
    %76 = vmatprep.subr.mxu0 0.0
    %77 = vmatpush1.msra.mxu0 %v50
    %78 = vmatprep.subr.mxu0 0.0
    %79 = vmatpush1.msra.mxu0 %v51
    %80 = vmatprep.subr.mxu0 0.0
    %81 = vmatpush1.msra.mxu0 %v52
    %82 = vmatprep.subr.mxu0 0.0
    %83 = vmatpush1.msra.mxu0 %v53
    %84 = vmatprep.subr.mxu0 0.0
    %85 = vmatpush1.msra.mxu0 0.0
    %86 = vmatprep.subr.mxu0 0.0
    %87 = vmatpush1.msra.mxu0 0.0
    %88 = vmatprep.subr.mxu0 0.0
    %89 = vmatpush1.msra.mxu0 0.0
    %90 = vmatprep.subr.mxu0 0.0
    %91 = vmatpush1.msra.mxu0 0.0
    %92 = vmatprep.subr.mxu0 0.0
    %93 = vmatpush1.msra.mxu0 0.0
    %94 = vmatprep.subr.mxu0 0.0
    %95 = vmatpush1.msra.mxu0 0.0
    %96 = vmatprep.subr.mxu0 0.0
    %97 = vmatpush1.msra.mxu0 0.0
    %98 = vmatprep.subr.mxu0 0.0
    %99 = vmatpush1.msra.mxu0 0.0
    %100 = vmatprep.subr.mxu0 0.0
    %101 = vmatpush1.msra.mxu0 0.0
    %102 = vmatprep.subr.mxu0 0.0
    %103 = vmatpush1.msra.mxu0 0.0
    %104 = vmatprep.subr.mxu0 0.0
    %105 = vmatpush1.msra.mxu0 0.0
    %106 = vmatprep.subr.mxu0 0.0
    %107 = vmatpush1.msra.mxu0 0.0
    %108 = vmatprep.subr.mxu0 0.0
    %109 = vmatpush1.msra.mxu0 0.0
    %110 = vmatprep.subr.mxu0 0.0
    %111 = vmatpush1.msra.mxu0 0.0
    %112 = vmatprep.subr.mxu0 0.0
    %113 = vmatpush1.msra.mxu0 0.0
    %114 = vmatprep.subr.mxu0 0.0
    %115 = vmatpush1.msra.mxu0 0.0
    %116 = vmatprep.subr.mxu0 0.0
    %117 = vmatpush1.msra.mxu0 0.0
    %118 = vmatprep.subr.mxu0 0.0
    %119 = vmatpush1.msra.mxu0 0.0
    %120 = vmatprep.subr.mxu0 0.0
    %121 = vmatpush1.msra.mxu0 0.0
    %122 = vmatprep.subr.mxu0 0.0
    %123 = vmatpush1.msra.mxu0 0.0
    %124 = vmatprep.subr.mxu0 0.0
    %125 = vmatpush1.msra.mxu0 0.0
    %126 = vmatprep.subr.mxu0 0.0
    %127 = vmatpush1.msra.mxu0 0.0
    %128 = vmatprep.subr.mxu0 0.0
    %129 = vmatpush1.msra.mxu0 0.0
    %130 = vmatprep.subr.mxu0 0.0
    %131 = vmatpush1.msra.mxu0 0.0
    %132 = vmatprep.subr.mxu0 0.0
    %133 = vmatpush1.msra.mxu0 0.0
    %134 = vmatprep.subr.mxu0 0.0
    %135 = vmatpush1.msra.mxu0 0.0
    %136 = vmatprep.subr.mxu0 0.0
    %137 = vmatpush1.msra.mxu0 0.0
    %138 = vmatprep.subr.mxu0 0.0
    %139 = vmatpush1.msra.mxu0 0.0
    %140 = vmatprep.mubr.f32.mxu0 0.0
    %141 = vmatmul.mubr.f32.gmra.mrb[0].mxu0 %v65
    %v142 = vpop.f32.mrb[0].mxu0
    %v143 = vadd.f32 0.0, %v142
    %v144 = vpop.f32.mrb[0].mxu0
    %145 = vmatprep.mubr.f32.mxu0 0.0
    %146 = vmatmul.mubr.f32.gmra.mrb[0].mxu0 %v68
    %v147 = vpop.f32.mrb[0].mxu0
    %v148 = vadd.f32 0.0, %v147
    %v149 = vpop.f32.mrb[0].mxu0
    %150 = vmatprep.mubr.f32.mxu0 0.0
    %151 = vmatmul.mubr.f32.gmra.mrb[0].mxu0 %v71
    %v152 = vpop.f32.mrb[0].mxu0
    %v153 = vadd.f32 0.0, %v152
    %v154 = vpop.f32.mrb[0].mxu0
    %155 = vmatprep.mubr.f32.mxu0 0.0
    %156 = vmatmul.mubr.f32.gmra.mrb[0].mxu0 %v74
    %v157 = vpop.f32.mrb[0].mxu0
    %v158 = vadd.f32 0.0, %v157
    %v159 = vpop.f32.mrb[0].mxu0
    %160 = vdwg.mxu0
    %163 = vrot.lane.b32.xlu0 %v143, 120
    %v164 = vpop.permute.xlu0 %163
    %165 = vrot.lane.b32.xlu0 %v148, 120
    %v166 = vpop.permute.xlu0 %165
    %167 = vrot.lane.b32.xlu0 %v143, 112
    %v168 = vpop.permute.xlu0 %167
    %169 = vrot.lane.b32.xlu0 %v148, 112
    %v170 = vpop.permute.xlu0 %169
    %171 = vrot.lane.b32.xlu0 %v143, 104
    %v172 = vpop.permute.xlu0 %171
    %173 = vrot.lane.b32.xlu0 %v148, 104
    %v174 = vpop.permute.xlu0 %173
    %177 = vrot.lane.b32.xlu0 %v153, 120
    %v178 = vpop.permute.xlu0 %177
    %179 = vrot.lane.b32.xlu0 %v158, 120
    %v180 = vpop.permute.xlu0 %179
    %181 = vrot.lane.b32.xlu0 %v153, 112
    %v182 = vpop.permute.xlu0 %181
    %183 = vrot.lane.b32.xlu0 %v158, 112
    %v184 = vpop.permute.xlu0 %183
    %185 = vrot.lane.b32.xlu0 %v153, 104
    %v186 = vpop.permute.xlu0 %185
    %187 = vrot.lane.b32.xlu0 %v158, 104
    %v188 = vpop.permute.xlu0 %187
    %189 = vrot.lane.b32.xlu0 %v153, 64
    %v190 = vpop.permute.xlu0 %189
    %vm191 = vcmask 64512
    %v192 = vsel %vm191, %v190, 0
    %v194 = vsel %vm191, %v143, 0
    %196 = vmatprep.subr.mxu0 0.0
    %197 = vmatpush1.xpose.msra.mxu0 %v194
    %198 = vmatprep.subr.mxu0 0.0
    %199 = vmatpush1.xpose.msra.mxu0 0.0
    %200 = vmatprep.subr.mxu0 0.0
    %201 = vmatpush1.xpose.msra.mxu0 0.0
    %202 = vmatprep.subr.mxu0 0.0
    %203 = vmatpush1.xpose.msra.mxu0 0.0
    %204 = vmatprep.subr.mxu0 0.0
    %205 = vmatpush1.xpose.msra.mxu0 0.0
    %206 = vmatprep.subr.mxu0 0.0
    %207 = vmatpush1.xpose.msra.mxu0 0.0
    %208 = vmatprep.subr.mxu0 0.0
    %209 = vmatpush1.xpose.msra.mxu0 0.0
    %210 = vmatprep.subr.mxu0 0.0
    %211 = vmatpush1.xpose.msra.mxu0 0.0
    %212 = vmatprep.subr.mxu0 0.0
    %213 = vmatpush1.xpose.msra.mxu0 0.0
    %214 = vmatprep.subr.mxu0 0.0
    %215 = vmatpush1.xpose.msra.mxu0 0.0
    %216 = vmatprep.subr.mxu0 0.0
    %217 = vmatpush1.xpose.msra.mxu0 0.0
    %218 = vmatprep.subr.mxu0 0.0
    %219 = vmatpush1.xpose.msra.mxu0 0.0
    %220 = vmatprep.subr.mxu0 0.0
    %221 = vmatpush1.xpose.msra.mxu0 0.0
    %222 = vmatprep.subr.mxu0 0.0
    %223 = vmatpush1.xpose.msra.mxu0 0.0
    %224 = vmatprep.subr.mxu0 0.0
    %225 = vmatpush1.xpose.msra.mxu0 0.0
    %226 = vmatprep.subr.mxu0 0.0
    %227 = vmatpush1.xpose.msra.mxu0 0.0
    %228 = vmatprep.subr.mxu0 0.0
    %229 = vmatpush1.xpose.msra.mxu0 0.0
    %230 = vmatprep.subr.mxu0 0.0
    %231 = vmatpush1.xpose.msra.mxu0 0.0
    %232 = vmatprep.subr.mxu0 0.0
    %233 = vmatpush1.xpose.msra.mxu0 0.0
    %234 = vmatprep.subr.mxu0 0.0
    %235 = vmatpush1.xpose.msra.mxu0 0.0
    %236 = vmatprep.subr.mxu0 0.0
    %237 = vmatpush1.xpose.msra.mxu0 0.0
    %238 = vmatprep.subr.mxu0 0.0
    %239 = vmatpush1.xpose.msra.mxu0 0.0
    %240 = vmatprep.subr.mxu0 0.0
    %241 = vmatpush1.xpose.msra.mxu0 0.0
    %242 = vmatprep.subr.mxu0 0.0
    %243 = vmatpush1.xpose.msra.mxu0 0.0
    %244 = vmatprep.subr.mxu0 0.0
    %245 = vmatpush1.xpose.msra.mxu0 0.0
    %246 = vmatprep.subr.mxu0 0.0
    %247 = vmatpush1.xpose.msra.mxu0 0.0
    %248 = vmatprep.subr.mxu0 0.0
    %249 = vmatpush1.xpose.msra.mxu0 0.0
    %250 = vmatprep.subr.mxu0 0.0
    %251 = vmatpush1.xpose.msra.mxu0 0.0
    %252 = vmatprep.subr.mxu0 0.0
    %253 = vmatpush1.xpose.msra.mxu0 0.0
    %254 = vmatprep.subr.mxu0 0.0
    %255 = vmatpush1.xpose.msra.mxu0 0.0
    %256 = vmatprep.subr.mxu0 0.0
    %257 = vmatpush1.xpose.msra.mxu0 0.0
    %258 = vmatprep.subr.mxu0 0.0
    %259 = vmatpush1.xpose.msra.mxu0 0.0
    %260 = vmatprep.mubr.f32.mxu0 0.0
    %261 = vmatmul.mubr.f32.gmra.mrb[0].mxu0 %v192
    %v262 = vpop.f32.mrb[0].mxu0
    %v263 = vadd.f32 0.0, %v262
    %v264 = vpop.f32.mrb[0].mxu0
    %265 = vdwg.mxu0
    %266 = vrot.lane.b32.xlu0 %v158, 64
    %v267 = vpop.permute.xlu0 %266
    %v268 = vsel %vm191, %v267, 0
    %v270 = vsel %vm191, %v148, 0
    %272 = vmatprep.subr.mxu0 0.0
    %273 = vmatpush1.xpose.msra.mxu0 %v270
    %274 = vmatprep.subr.mxu0 0.0
    %275 = vmatpush1.xpose.msra.mxu0 0.0
    %276 = vmatprep.subr.mxu0 0.0
    %277 = vmatpush1.xpose.msra.mxu0 0.0
    %278 = vmatprep.subr.mxu0 0.0
    %279 = vmatpush1.xpose.msra.mxu0 0.0
    %280 = vmatprep.subr.mxu0 0.0
    %281 = vmatpush1.xpose.msra.mxu0 0.0
    %282 = vmatprep.subr.mxu0 0.0
    %283 = vmatpush1.xpose.msra.mxu0 0.0
    %284 = vmatprep.subr.mxu0 0.0
    %285 = vmatpush1.xpose.msra.mxu0 0.0
    %286 = vmatprep.subr.mxu0 0.0
    %287 = vmatpush1.xpose.msra.mxu0 0.0
    %288 = vmatprep.subr.mxu0 0.0
    %289 = vmatpush1.xpose.msra.mxu0 0.0
    %290 = vmatprep.subr.mxu0 0.0
    %291 = vmatpush1.xpose.msra.mxu0 0.0
    %292 = vmatprep.subr.mxu0 0.0
    %293 = vmatpush1.xpose.msra.mxu0 0.0
    %294 = vmatprep.subr.mxu0 0.0
    %295 = vmatpush1.xpose.msra.mxu0 0.0
    %296 = vmatprep.subr.mxu0 0.0
    %297 = vmatpush1.xpose.msra.mxu0 0.0
    %298 = vmatprep.subr.mxu0 0.0
    %299 = vmatpush1.xpose.msra.mxu0 0.0
    %300 = vmatprep.subr.mxu0 0.0
    %301 = vmatpush1.xpose.msra.mxu0 0.0
    %302 = vmatprep.subr.mxu0 0.0
    %303 = vmatpush1.xpose.msra.mxu0 0.0
    %304 = vmatprep.subr.mxu0 0.0
    %305 = vmatpush1.xpose.msra.mxu0 0.0
    %306 = vmatprep.subr.mxu0 0.0
    %307 = vmatpush1.xpose.msra.mxu0 0.0
    %308 = vmatprep.subr.mxu0 0.0
    %309 = vmatpush1.xpose.msra.mxu0 0.0
    %310 = vmatprep.subr.mxu0 0.0
    %311 = vmatpush1.xpose.msra.mxu0 0.0
    %312 = vmatprep.subr.mxu0 0.0
    %313 = vmatpush1.xpose.msra.mxu0 0.0
    %314 = vmatprep.subr.mxu0 0.0
    %315 = vmatpush1.xpose.msra.mxu0 0.0
    %316 = vmatprep.subr.mxu0 0.0
    %317 = vmatpush1.xpose.msra.mxu0 0.0
    %318 = vmatprep.subr.mxu0 0.0
    %319 = vmatpush1.xpose.msra.mxu0 0.0
    %320 = vmatprep.subr.mxu0 0.0
    %321 = vmatpush1.xpose.msra.mxu0 0.0
    %322 = vmatprep.subr.mxu0 0.0
    %323 = vmatpush1.xpose.msra.mxu0 0.0
    %324 = vmatprep.subr.mxu0 0.0
    %325 = vmatpush1.xpose.msra.mxu0 0.0
    %326 = vmatprep.subr.mxu0 0.0
    %327 = vmatpush1.xpose.msra.mxu0 0.0
    %328 = vmatprep.subr.mxu0 0.0
    %329 = vmatpush1.xpose.msra.mxu0 0.0
    %330 = vmatprep.subr.mxu0 0.0
    %331 = vmatpush1.xpose.msra.mxu0 0.0
    %332 = vmatprep.subr.mxu0 0.0
    %333 = vmatpush1.xpose.msra.mxu0 0.0
    %334 = vmatprep.subr.mxu0 0.0
    %335 = vmatpush1.xpose.msra.mxu0 0.0
    %336 = vmatprep.mubr.f32.mxu0 0.0
    %337 = vmatmul.mubr.f32.gmra.mrb[0].mxu0 %v268
    %v338 = vpop.f32.mrb[0].mxu0
    %v339 = vadd.f32 0.0, %v338
    %v340 = vpop.f32.mrb[0].mxu0
    %341 = vdwg.mxu0
    %342 = vrot.lane.b32.xlu0 %v178, 64
    %v343 = vpop.permute.xlu0 %342
    %v344 = vsel %vm191, %v343, 0
    %v346 = vsel %vm191, %v164, 0
    %348 = vmatprep.subr.mxu0 0.0
    %349 = vmatpush1.xpose.msra.mxu0 %v346
    %350 = vmatprep.subr.mxu0 0.0
    %351 = vmatpush1.xpose.msra.mxu0 0.0
    %352 = vmatprep.subr.mxu0 0.0
    %353 = vmatpush1.xpose.msra.mxu0 0.0
    %354 = vmatprep.subr.mxu0 0.0
    %355 = vmatpush1.xpose.msra.mxu0 0.0
    %356 = vmatprep.subr.mxu0 0.0
    %357 = vmatpush1.xpose.msra.mxu0 0.0
    %358 = vmatprep.subr.mxu0 0.0
    %359 = vmatpush1.xpose.msra.mxu0 0.0
    %360 = vmatprep.subr.mxu0 0.0
    %361 = vmatpush1.xpose.msra.mxu0 0.0
    %362 = vmatprep.subr.mxu0 0.0
    %363 = vmatpush1.xpose.msra.mxu0 0.0
    %364 = vmatprep.subr.mxu0 0.0
    %365 = vmatpush1.xpose.msra.mxu0 0.0
    %366 = vmatprep.subr.mxu0 0.0
    %367 = vmatpush1.xpose.msra.mxu0 0.0
    %368 = vmatprep.subr.mxu0 0.0
    %369 = vmatpush1.xpose.msra.mxu0 0.0
    %370 = vmatprep.subr.mxu0 0.0
    %371 = vmatpush1.xpose.msra.mxu0 0.0
    %372 = vmatprep.subr.mxu0 0.0
    %373 = vmatpush1.xpose.msra.mxu0 0.0
    %374 = vmatprep.subr.mxu0 0.0
    %375 = vmatpush1.xpose.msra.mxu0 0.0
    %376 = vmatprep.subr.mxu0 0.0
    %377 = vmatpush1.xpose.msra.mxu0 0.0
    %378 = vmatprep.subr.mxu0 0.0
    %379 = vmatpush1.xpose.msra.mxu0 0.0
    %380 = vmatprep.subr.mxu0 0.0
    %381 = vmatpush1.xpose.msra.mxu0 0.0
    %382 = vmatprep.subr.mxu0 0.0
    %383 = vmatpush1.xpose.msra.mxu0 0.0
    %384 = vmatprep.subr.mxu0 0.0
    %385 = vmatpush1.xpose.msra.mxu0 0.0
    %386 = vmatprep.subr.mxu0 0.0
    %387 = vmatpush1.xpose.msra.mxu0 0.0
    %388 = vmatprep.subr.mxu0 0.0
    %389 = vmatpush1.xpose.msra.mxu0 0.0
    %390 = vmatprep.subr.mxu0 0.0
    %391 = vmatpush1.xpose.msra.mxu0 0.0
    %392 = vmatprep.subr.mxu0 0.0
    %393 = vmatpush1.xpose.msra.mxu0 0.0
    %394 = vmatprep.subr.mxu0 0.0
    %395 = vmatpush1.xpose.msra.mxu0 0.0
    %396 = vmatprep.subr.mxu0 0.0
    %397 = vmatpush1.xpose.msra.mxu0 0.0
    %398 = vmatprep.subr.mxu0 0.0
    %399 = vmatpush1.xpose.msra.mxu0 0.0
    %400 = vmatprep.subr.mxu0 0.0
    %401 = vmatpush1.xpose.msra.mxu0 0.0
    %402 = vmatprep.subr.mxu0 0.0
    %403 = vmatpush1.xpose.msra.mxu0 0.0
    %404 = vmatprep.subr.mxu0 0.0
    %405 = vmatpush1.xpose.msra.mxu0 0.0
    %406 = vmatprep.subr.mxu0 0.0
    %407 = vmatpush1.xpose.msra.mxu0 0.0
    %408 = vmatprep.subr.mxu0 0.0
    %409 = vmatpush1.xpose.msra.mxu0 0.0
    %410 = vmatprep.subr.mxu0 0.0
    %411 = vmatpush1.xpose.msra.mxu0 0.0
    %412 = vmatprep.mubr.f32.mxu0 0.0
    %413 = vmatmul.mubr.f32.gmra.mrb[0].mxu0 %v344
    %v414 = vpop.f32.mrb[0].mxu0
    %v415 = vadd.f32 0.0, %v414
    %v416 = vpop.f32.mrb[0].mxu0
    %417 = vdwg.mxu0
    %418 = vrot.lane.b32.xlu0 %v180, 64
    %v419 = vpop.permute.xlu0 %418
    %v420 = vsel %vm191, %v419, 0
    %v422 = vsel %vm191, %v166, 0
    %424 = vmatprep.subr.mxu0 0.0
    %425 = vmatpush1.xpose.msra.mxu0 %v422
    %426 = vmatprep.subr.mxu0 0.0
    %427 = vmatpush1.xpose.msra.mxu0 0.0
    %428 = vmatprep.subr.mxu0 0.0
    %429 = vmatpush1.xpose.msra.mxu0 0.0
    %430 = vmatprep.subr.mxu0 0.0
    %431 = vmatpush1.xpose.msra.mxu0 0.0
    %432 = vmatprep.subr.mxu0 0.0
    %433 = vmatpush1.xpose.msra.mxu0 0.0
    %434 = vmatprep.subr.mxu0 0.0
    %435 = vmatpush1.xpose.msra.mxu0 0.0
    %436 = vmatprep.subr.mxu0 0.0
    %437 = vmatpush1.xpose.msra.mxu0 0.0
    %438 = vmatprep.subr.mxu0 0.0
    %439 = vmatpush1.xpose.msra.mxu0 0.0
    %440 = vmatprep.subr.mxu0 0.0
    %441 = vmatpush1.xpose.msra.mxu0 0.0
    %442 = vmatprep.subr.mxu0 0.0
    %443 = vmatpush1.xpose.msra.mxu0 0.0
    %444 = vmatprep.subr.mxu0 0.0
    %445 = vmatpush1.xpose.msra.mxu0 0.0
    %446 = vmatprep.subr.mxu0 0.0
    %447 = vmatpush1.xpose.msra.mxu0 0.0
    %448 = vmatprep.subr.mxu0 0.0
    %449 = vmatpush1.xpose.msra.mxu0 0.0
    %450 = vmatprep.subr.mxu0 0.0
    %451 = vmatpush1.xpose.msra.mxu0 0.0
    %452 = vmatprep.subr.mxu0 0.0
    %453 = vmatpush1.xpose.msra.mxu0 0.0
    %454 = vmatprep.subr.mxu0 0.0
    %455 = vmatpush1.xpose.msra.mxu0 0.0
    %456 = vmatprep.subr.mxu0 0.0
    %457 = vmatpush1.xpose.msra.mxu0 0.0
    %458 = vmatprep.subr.mxu0 0.0
    %459 = vmatpush1.xpose.msra.mxu0 0.0
    %460 = vmatprep.subr.mxu0 0.0
    %461 = vmatpush1.xpose.msra.mxu0 0.0
    %462 = vmatprep.subr.mxu0 0.0
    %463 = vmatpush1.xpose.msra.mxu0 0.0
    %464 = vmatprep.subr.mxu0 0.0
    %465 = vmatpush1.xpose.msra.mxu0 0.0
    %466 = vmatprep.subr.mxu0 0.0
    %467 = vmatpush1.xpose.msra.mxu0 0.0
    %468 = vmatprep.subr.mxu0 0.0
    %469 = vmatpush1.xpose.msra.mxu0 0.0
    %470 = vmatprep.subr.mxu0 0.0
    %471 = vmatpush1.xpose.msra.mxu0 0.0
    %472 = vmatprep.subr.mxu0 0.0
    %473 = vmatpush1.xpose.msra.mxu0 0.0
    %474 = vmatprep.subr.mxu0 0.0
    %475 = vmatpush1.xpose.msra.mxu0 0.0
    %476 = vmatprep.subr.mxu0 0.0
    %477 = vmatpush1.xpose.msra.mxu0 0.0
    %478 = vmatprep.subr.mxu0 0.0
    %479 = vmatpush1.xpose.msra.mxu0 0.0
    %480 = vmatprep.subr.mxu0 0.0
    %481 = vmatpush1.xpose.msra.mxu0 0.0
    %482 = vmatprep.subr.mxu0 0.0
    %483 = vmatpush1.xpose.msra.mxu0 0.0
    %484 = vmatprep.subr.mxu0 0.0
    %485 = vmatpush1.xpose.msra.mxu0 0.0
    %486 = vmatprep.subr.mxu0 0.0
    %487 = vmatpush1.xpose.msra.mxu0 0.0
    %488 = vmatprep.mubr.f32.mxu0 0.0
    %489 = vmatmul.mubr.f32.gmra.mrb[0].mxu0 %v420
    %v490 = vpop.f32.mrb[0].mxu0
    %v491 = vadd.f32 0.0, %v490
    %v492 = vpop.f32.mrb[0].mxu0
    %493 = vdwg.mxu0
    %494 = vrot.lane.b32.xlu0 %v182, 64
    %v495 = vpop.permute.xlu0 %494
    %v496 = vsel %vm191, %v495, 0
    %v498 = vsel %vm191, %v168, 0
    %500 = vmatprep.subr.mxu0 0.0
    %501 = vmatpush1.xpose.msra.mxu0 %v498
    %502 = vmatprep.subr.mxu0 0.0
    %503 = vmatpush1.xpose.msra.mxu0 0.0
    %504 = vmatprep.subr.mxu0 0.0
    %505 = vmatpush1.xpose.msra.mxu0 0.0
    %506 = vmatprep.subr.mxu0 0.0
    %507 = vmatpush1.xpose.msra.mxu0 0.0
    %508 = vmatprep.subr.mxu0 0.0
    %509 = vmatpush1.xpose.msra.mxu0 0.0
    %510 = vmatprep.subr.mxu0 0.0
    %511 = vmatpush1.xpose.msra.mxu0 0.0
    %512 = vmatprep.subr.mxu0 0.0
    %513 = vmatpush1.xpose.msra.mxu0 0.0
    %514 = vmatprep.subr.mxu0 0.0
    %515 = vmatpush1.xpose.msra.mxu0 0.0
    %516 = vmatprep.subr.mxu0 0.0
    %517 = vmatpush1.xpose.msra.mxu0 0.0
    %518 = vmatprep.subr.mxu0 0.0
    %519 = vmatpush1.xpose.msra.mxu0 0.0
    %520 = vmatprep.subr.mxu0 0.0
    %521 = vmatpush1.xpose.msra.mxu0 0.0
    %522 = vmatprep.subr.mxu0 0.0
    %523 = vmatpush1.xpose.msra.mxu0 0.0
    %524 = vmatprep.subr.mxu0 0.0
    %525 = vmatpush1.xpose.msra.mxu0 0.0
    %526 = vmatprep.subr.mxu0 0.0
    %527 = vmatpush1.xpose.msra.mxu0 0.0
    %528 = vmatprep.subr.mxu0 0.0
    %529 = vmatpush1.xpose.msra.mxu0 0.0
    %530 = vmatprep.subr.mxu0 0.0
    %531 = vmatpush1.xpose.msra.mxu0 0.0
    %532 = vmatprep.subr.mxu0 0.0
    %533 = vmatpush1.xpose.msra.mxu0 0.0
    %534 = vmatprep.subr.mxu0 0.0
    %535 = vmatpush1.xpose.msra.mxu0 0.0
    %536 = vmatprep.subr.mxu0 0.0
    %537 = vmatpush1.xpose.msra.mxu0 0.0
    %538 = vmatprep.subr.mxu0 0.0
    %539 = vmatpush1.xpose.msra.mxu0 0.0
    %540 = vmatprep.subr.mxu0 0.0
    %541 = vmatpush1.xpose.msra.mxu0 0.0
    %542 = vmatprep.subr.mxu0 0.0
    %543 = vmatpush1.xpose.msra.mxu0 0.0
    %544 = vmatprep.subr.mxu0 0.0
    %545 = vmatpush1.xpose.msra.mxu0 0.0
    %546 = vmatprep.subr.mxu0 0.0
    %547 = vmatpush1.xpose.msra.mxu0 0.0
    %548 = vmatprep.subr.mxu0 0.0
    %549 = vmatpush1.xpose.msra.mxu0 0.0
    %550 = vmatprep.subr.mxu0 0.0
    %551 = vmatpush1.xpose.msra.mxu0 0.0
    %552 = vmatprep.subr.mxu0 0.0
    %553 = vmatpush1.xpose.msra.mxu0 0.0
    %554 = vmatprep.subr.mxu0 0.0
    %555 = vmatpush1.xpose.msra.mxu0 0.0
    %556 = vmatprep.subr.mxu0 0.0
    %557 = vmatpush1.xpose.msra.mxu0 0.0
    %558 = vmatprep.subr.mxu0 0.0
    %559 = vmatpush1.xpose.msra.mxu0 0.0
    %560 = vmatprep.subr.mxu0 0.0
    %561 = vmatpush1.xpose.msra.mxu0 0.0
    %562 = vmatprep.subr.mxu0 0.0
    %563 = vmatpush1.xpose.msra.mxu0 0.0
    %564 = vmatprep.mubr.f32.mxu0 0.0
    %565 = vmatmul.mubr.f32.gmra.mrb[0].mxu0 %v496
    %v566 = vpop.f32.mrb[0].mxu0
    %v567 = vadd.f32 0.0, %v566
    %v568 = vpop.f32.mrb[0].mxu0
    %569 = vdwg.mxu0
    %570 = vrot.lane.b32.xlu0 %v184, 64
    %v571 = vpop.permute.xlu0 %570
    %v572 = vsel %vm191, %v571, 0
    %v574 = vsel %vm191, %v170, 0
    %576 = vmatprep.subr.mxu0 0.0
    %577 = vmatpush1.xpose.msra.mxu0 %v574
    %578 = vmatprep.subr.mxu0 0.0
    %579 = vmatpush1.xpose.msra.mxu0 0.0
    %580 = vmatprep.subr.mxu0 0.0
    %581 = vmatpush1.xpose.msra.mxu0 0.0
    %582 = vmatprep.subr.mxu0 0.0
    %583 = vmatpush1.xpose.msra.mxu0 0.0
    %584 = vmatprep.subr.mxu0 0.0
    %585 = vmatpush1.xpose.msra.mxu0 0.0
    %586 = vmatprep.subr.mxu0 0.0
    %587 = vmatpush1.xpose.msra.mxu0 0.0
    %588 = vmatprep.subr.mxu0 0.0
    %589 = vmatpush1.xpose.msra.mxu0 0.0
    %590 = vmatprep.subr.mxu0 0.0
    %591 = vmatpush1.xpose.msra.mxu0 0.0
    %592 = vmatprep.subr.mxu0 0.0
    %593 = vmatpush1.xpose.msra.mxu0 0.0
    %594 = vmatprep.subr.mxu0 0.0
    %595 = vmatpush1.xpose.msra.mxu0 0.0
    %596 = vmatprep.subr.mxu0 0.0
    %597 = vmatpush1.xpose.msra.mxu0 0.0
    %598 = vmatprep.subr.mxu0 0.0
    %599 = vmatpush1.xpose.msra.mxu0 0.0
    %600 = vmatprep.subr.mxu0 0.0
    %601 = vmatpush1.xpose.msra.mxu0 0.0
    %602 = vmatprep.subr.mxu0 0.0
    %603 = vmatpush1.xpose.msra.mxu0 0.0
    %604 = vmatprep.subr.mxu0 0.0
    %605 = vmatpush1.xpose.msra.mxu0 0.0
    %606 = vmatprep.subr.mxu0 0.0
    %607 = vmatpush1.xpose.msra.mxu0 0.0
    %608 = vmatprep.subr.mxu0 0.0
    %609 = vmatpush1.xpose.msra.mxu0 0.0
    %610 = vmatprep.subr.mxu0 0.0
    %611 = vmatpush1.xpose.msra.mxu0 0.0
    %612 = vmatprep.subr.mxu0 0.0
    %613 = vmatpush1.xpose.msra.mxu0 0.0
    %614 = vmatprep.subr.mxu0 0.0
    %615 = vmatpush1.xpose.msra.mxu0 0.0
    %616 = vmatprep.subr.mxu0 0.0
    %617 = vmatpush1.xpose.msra.mxu0 0.0
    %618 = vmatprep.subr.mxu0 0.0
    %619 = vmatpush1.xpose.msra.mxu0 0.0
    %620 = vmatprep.subr.mxu0 0.0
    %621 = vmatpush1.xpose.msra.mxu0 0.0
    %622 = vmatprep.subr.mxu0 0.0
    %623 = vmatpush1.xpose.msra.mxu0 0.0
    %624 = vmatprep.subr.mxu0 0.0
    %625 = vmatpush1.xpose.msra.mxu0 0.0
    %626 = vmatprep.subr.mxu0 0.0
    %627 = vmatpush1.xpose.msra.mxu0 0.0
    %628 = vmatprep.subr.mxu0 0.0
    %629 = vmatpush1.xpose.msra.mxu0 0.0
    %630 = vmatprep.subr.mxu0 0.0
    %631 = vmatpush1.xpose.msra.mxu0 0.0
    %632 = vmatprep.subr.mxu0 0.0
    %633 = vmatpush1.xpose.msra.mxu0 0.0
    %634 = vmatprep.subr.mxu0 0.0
    %635 = vmatpush1.xpose.msra.mxu0 0.0
    %636 = vmatprep.subr.mxu0 0.0
    %637 = vmatpush1.xpose.msra.mxu0 0.0
    %638 = vmatprep.subr.mxu0 0.0
    %639 = vmatpush1.xpose.msra.mxu0 0.0
    %640 = vmatprep.mubr.f32.mxu0 0.0
    %641 = vmatmul.mubr.f32.gmra.mrb[0].mxu0 %v572
    %v642 = vpop.f32.mrb[0].mxu0
    %v643 = vadd.f32 0.0, %v642
    %v644 = vpop.f32.mrb[0].mxu0
    %645 = vdwg.mxu0
    %646 = vrot.lane.b32.xlu0 %v186, 64
    %v647 = vpop.permute.xlu0 %646
    %v648 = vsel %vm191, %v647, 0
    %v650 = vsel %vm191, %v172, 0
    %652 = vmatprep.subr.mxu0 0.0
    %653 = vmatpush1.xpose.msra.mxu0 %v650
    %654 = vmatprep.subr.mxu0 0.0
    %655 = vmatpush1.xpose.msra.mxu0 0.0
    %656 = vmatprep.subr.mxu0 0.0
    %657 = vmatpush1.xpose.msra.mxu0 0.0
    %658 = vmatprep.subr.mxu0 0.0
    %659 = vmatpush1.xpose.msra.mxu0 0.0
    %660 = vmatprep.subr.mxu0 0.0
    %661 = vmatpush1.xpose.msra.mxu0 0.0
    %662 = vmatprep.subr.mxu0 0.0
    %663 = vmatpush1.xpose.msra.mxu0 0.0
    %664 = vmatprep.subr.mxu0 0.0
    %665 = vmatpush1.xpose.msra.mxu0 0.0
    %666 = vmatprep.subr.mxu0 0.0
    %667 = vmatpush1.xpose.msra.mxu0 0.0
    %668 = vmatprep.subr.mxu0 0.0
    %669 = vmatpush1.xpose.msra.mxu0 0.0
    %670 = vmatprep.subr.mxu0 0.0
    %671 = vmatpush1.xpose.msra.mxu0 0.0
    %672 = vmatprep.subr.mxu0 0.0
    %673 = vmatpush1.xpose.msra.mxu0 0.0
    %674 = vmatprep.subr.mxu0 0.0
    %675 = vmatpush1.xpose.msra.mxu0 0.0
    %676 = vmatprep.subr.mxu0 0.0
    %677 = vmatpush1.xpose.msra.mxu0 0.0
    %678 = vmatprep.subr.mxu0 0.0
    %679 = vmatpush1.xpose.msra.mxu0 0.0
    %680 = vmatprep.subr.mxu0 0.0
    %681 = vmatpush1.xpose.msra.mxu0 0.0
    %682 = vmatprep.subr.mxu0 0.0
    %683 = vmatpush1.xpose.msra.mxu0 0.0
    %684 = vmatprep.subr.mxu0 0.0
    %685 = vmatpush1.xpose.msra.mxu0 0.0
    %686 = vmatprep.subr.mxu0 0.0
    %687 = vmatpush1.xpose.msra.mxu0 0.0
    %688 = vmatprep.subr.mxu0 0.0
    %689 = vmatpush1.xpose.msra.mxu0 0.0
    %690 = vmatprep.subr.mxu0 0.0
    %691 = vmatpush1.xpose.msra.mxu0 0.0
    %692 = vmatprep.subr.mxu0 0.0
    %693 = vmatpush1.xpose.msra.mxu0 0.0
    %694 = vmatprep.subr.mxu0 0.0
    %695 = vmatpush1.xpose.msra.mxu0 0.0
    %696 = vmatprep.subr.mxu0 0.0
    %697 = vmatpush1.xpose.msra.mxu0 0.0
    %698 = vmatprep.subr.mxu0 0.0
    %699 = vmatpush1.xpose.msra.mxu0 0.0
    %700 = vmatprep.subr.mxu0 0.0
    %701 = vmatpush1.xpose.msra.mxu0 0.0
    %702 = vmatprep.subr.mxu0 0.0
    %703 = vmatpush1.xpose.msra.mxu0 0.0
    %704 = vmatprep.subr.mxu0 0.0
    %705 = vmatpush1.xpose.msra.mxu0 0.0
    %706 = vmatprep.subr.mxu0 0.0
    %707 = vmatpush1.xpose.msra.mxu0 0.0
    %708 = vmatprep.subr.mxu0 0.0
    %709 = vmatpush1.xpose.msra.mxu0 0.0
    %710 = vmatprep.subr.mxu0 0.0
    %711 = vmatpush1.xpose.msra.mxu0 0.0
    %712 = vmatprep.subr.mxu0 0.0
    %713 = vmatpush1.xpose.msra.mxu0 0.0
    %714 = vmatprep.subr.mxu0 0.0
    %715 = vmatpush1.xpose.msra.mxu0 0.0
    %716 = vmatprep.mubr.f32.mxu0 0.0
    %717 = vmatmul.mubr.f32.gmra.mrb[0].mxu0 %v648
    %v718 = vpop.f32.mrb[0].mxu0
    %v719 = vadd.f32 0.0, %v718
    %v720 = vpop.f32.mrb[0].mxu0
    %721 = vdwg.mxu0
    %722 = vrot.lane.b32.xlu0 %v188, 64
    %v723 = vpop.permute.xlu0 %722
    %v724 = vsel %vm191, %v723, 0
    %v726 = vsel %vm191, %v174, 0
    %728 = vmatprep.subr.mxu0 0.0
    %729 = vmatpush1.xpose.msra.mxu0 %v726
    %730 = vmatprep.subr.mxu0 0.0
    %731 = vmatpush1.xpose.msra.mxu0 0.0
    %732 = vmatprep.subr.mxu0 0.0
    %733 = vmatpush1.xpose.msra.mxu0 0.0
    %734 = vmatprep.subr.mxu0 0.0
    %735 = vmatpush1.xpose.msra.mxu0 0.0
    %736 = vmatprep.subr.mxu0 0.0
    %737 = vmatpush1.xpose.msra.mxu0 0.0
    %738 = vmatprep.subr.mxu0 0.0
    %739 = vmatpush1.xpose.msra.mxu0 0.0
    %740 = vmatprep.subr.mxu0 0.0
    %741 = vmatpush1.xpose.msra.mxu0 0.0
    %742 = vmatprep.subr.mxu0 0.0
    %743 = vmatpush1.xpose.msra.mxu0 0.0
    %744 = vmatprep.subr.mxu0 0.0
    %745 = vmatpush1.xpose.msra.mxu0 0.0
    %746 = vmatprep.subr.mxu0 0.0
    %747 = vmatpush1.xpose.msra.mxu0 0.0
    %748 = vmatprep.subr.mxu0 0.0
    %749 = vmatpush1.xpose.msra.mxu0 0.0
    %750 = vmatprep.subr.mxu0 0.0
    %751 = vmatpush1.xpose.msra.mxu0 0.0
    %752 = vmatprep.subr.mxu0 0.0
    %753 = vmatpush1.xpose.msra.mxu0 0.0
    %754 = vmatprep.subr.mxu0 0.0
    %755 = vmatpush1.xpose.msra.mxu0 0.0
    %756 = vmatprep.subr.mxu0 0.0
    %757 = vmatpush1.xpose.msra.mxu0 0.0
    %758 = vmatprep.subr.mxu0 0.0
    %759 = vmatpush1.xpose.msra.mxu0 0.0
    %760 = vmatprep.subr.mxu0 0.0
    %761 = vmatpush1.xpose.msra.mxu0 0.0
    %762 = vmatprep.subr.mxu0 0.0
    %763 = vmatpush1.xpose.msra.mxu0 0.0
    %764 = vmatprep.subr.mxu0 0.0
    %765 = vmatpush1.xpose.msra.mxu0 0.0
    %766 = vmatprep.subr.mxu0 0.0
    %767 = vmatpush1.xpose.msra.mxu0 0.0
    %768 = vmatprep.subr.mxu0 0.0
    %769 = vmatpush1.xpose.msra.mxu0 0.0
    %770 = vmatprep.subr.mxu0 0.0
    %771 = vmatpush1.xpose.msra.mxu0 0.0
    %772 = vmatprep.subr.mxu0 0.0
    %773 = vmatpush1.xpose.msra.mxu0 0.0
    %774 = vmatprep.subr.mxu0 0.0
    %775 = vmatpush1.xpose.msra.mxu0 0.0
    %776 = vmatprep.subr.mxu0 0.0
    %777 = vmatpush1.xpose.msra.mxu0 0.0
    %778 = vmatprep.subr.mxu0 0.0
    %779 = vmatpush1.xpose.msra.mxu0 0.0
    %780 = vmatprep.subr.mxu0 0.0
    %781 = vmatpush1.xpose.msra.mxu0 0.0
    %782 = vmatprep.subr.mxu0 0.0
    %783 = vmatpush1.xpose.msra.mxu0 0.0
    %784 = vmatprep.subr.mxu0 0.0
    %785 = vmatpush1.xpose.msra.mxu0 0.0
    %786 = vmatprep.subr.mxu0 0.0
    %787 = vmatpush1.xpose.msra.mxu0 0.0
    %788 = vmatprep.subr.mxu0 0.0
    %789 = vmatpush1.xpose.msra.mxu0 0.0
    %790 = vmatprep.subr.mxu0 0.0
    %791 = vmatpush1.xpose.msra.mxu0 0.0
    %792 = vmatprep.mubr.f32.mxu0 0.0
    %793 = vmatmul.mubr.f32.gmra.mrb[0].mxu0 %v724
    %v794 = vpop.f32.mrb[0].mxu0
    %v795 = vadd.f32 0.0, %v794
    %v796 = vpop.f32.mrb[0].mxu0
    %797 = vdwg.mxu0
    %v798 = vmul.f32 %v263, 0.35355338
    %v799 = vmul.f32 %v339, 0.35355338
    %v800 = vmul.f32 %v415, 0.35355338
    %v801 = vmul.f32 %v491, 0.35355338
    %v802 = vmul.f32 %v567, 0.35355338
    %v803 = vmul.f32 %v643, 0.35355338
    %v804 = vmul.f32 %v719, 0.35355338
    %v805 = vmul.f32 %v795, 0.35355338
    %v806 = vsel %vm191, %v798, -inf
    %807 = vmax.xlane.f32.xlu0 %v806
    %v808 = vpop.xlane.xlu0 %807
    %v809 = vsel %vm191, %v799, -inf
    %810 = vmax.xlane.f32.xlu0 %v809
    %v811 = vpop.xlane.xlu0 %810
    %v812 = vsel %vm191, %v800, -inf
    %813 = vmax.xlane.f32.xlu0 %v812
    %v814 = vpop.xlane.xlu0 %813
    %v815 = vsel %vm191, %v801, -inf
    %816 = vmax.xlane.f32.xlu0 %v815
    %v817 = vpop.xlane.xlu0 %816
    %v818 = vsel %vm191, %v802, -inf
    %819 = vmax.xlane.f32.xlu0 %v818
    %v820 = vpop.xlane.xlu0 %819
    %v821 = vsel %vm191, %v803, -inf
    %822 = vmax.xlane.f32.xlu0 %v821
    %v823 = vpop.xlane.xlu0 %822
    %v824 = vsel %vm191, %v804, -inf
    %825 = vmax.xlane.f32.xlu0 %v824
    %v826 = vpop.xlane.xlu0 %825
    %v827 = vsel %vm191, %v805, -inf
    %828 = vmax.xlane.f32.xlu0 %v827
    %v829 = vpop.xlane.xlu0 %828
    %v830 = vsub.f32 %v798, %v808
    %v831 = vsub.f32 %v799, %v811
    %v832 = vsub.f32 %v800, %v814
    %v833 = vsub.f32 %v801, %v817
    %v834 = vsub.f32 %v802, %v820
    %v835 = vsub.f32 %v803, %v823
    %v836 = vsub.f32 %v804, %v826
    %v837 = vsub.f32 %v805, %v829
    %v838 = vmul.f32 %v830, 1.442695
    %v839 = vpow.pop %v838
    %v840 = vmul.f32 %v831, 1.442695
    %v841 = vpow.pop %v840
    %v842 = vmul.f32 %v832, 1.442695
    %v843 = vpow.pop %v842
    %v844 = vmul.f32 %v833, 1.442695
    %v845 = vpow.pop %v844
    %v846 = vmul.f32 %v834, 1.442695
    %v847 = vpow.pop %v846
    %v848 = vmul.f32 %v835, 1.442695
    %v849 = vpow.pop %v848
    %v850 = vmul.f32 %v836, 1.442695
    %v851 = vpow.pop %v850
    %v852 = vmul.f32 %v837, 1.442695
    %v853 = vpow.pop %v852
    %v854 = vsel %vm191, %v839, 0.0
    %855 = vadd.xlane.f32.xlu0 %v854
    %v856 = vpop.xlane.xlu0 %855
    %v857 = vsel %vm191, %v841, 0.0
    %858 = vadd.xlane.f32.xlu0 %v857
    %v859 = vpop.xlane.xlu0 %858
    %v860 = vsel %vm191, %v843, 0.0
    %861 = vadd.xlane.f32.xlu0 %v860
    %v862 = vpop.xlane.xlu0 %861
    %v863 = vsel %vm191, %v845, 0.0
    %864 = vadd.xlane.f32.xlu0 %v863
    %v865 = vpop.xlane.xlu0 %864
    %v866 = vsel %vm191, %v847, 0.0
    %867 = vadd.xlane.f32.xlu0 %v866
    %v868 = vpop.xlane.xlu0 %867
    %v869 = vsel %vm191, %v849, 0.0
    %870 = vadd.xlane.f32.xlu0 %v869
    %v871 = vpop.xlane.xlu0 %870
    %v872 = vsel %vm191, %v851, 0.0
    %873 = vadd.xlane.f32.xlu0 %v872
    %v874 = vpop.xlane.xlu0 %873
    %v875 = vsel %vm191, %v853, 0.0
    %876 = vadd.xlane.f32.xlu0 %v875
    %v877 = vpop.xlane.xlu0 %876
    %v878 = vrcp.pop %v856
    %v879 = vmul.f32 %v839, %v878
    %v880 = vrcp.pop %v859
    %v881 = vmul.f32 %v841, %v880
    %v882 = vrcp.pop %v862
    %v883 = vmul.f32 %v843, %v882
    %v884 = vrcp.pop %v865
    %v885 = vmul.f32 %v845, %v884
    %v886 = vrcp.pop %v868
    %v887 = vmul.f32 %v847, %v886
    %v888 = vrcp.pop %v871
    %v889 = vmul.f32 %v849, %v888
    %v890 = vrcp.pop %v874
    %v891 = vmul.f32 %v851, %v890
    %v892 = vrcp.pop %v877
    %v893 = vmul.f32 %v853, %v892
    %894 = vst.msk [vmem:[#allocation8] sm:$0xff] %vm191, %v879
    %895 = vst.msk [vmem:[#allocation8 + $0x8] sm:$0xff] %vm191, %v881
    %896 = vst.msk [vmem:[#allocation8 + $0x10] sm:$0xff] %vm191, %v883
    %897 = vst.msk [vmem:[#allocation8 + $0x18] sm:$0xff] %vm191, %v885
    %898 = vst.msk [vmem:[#allocation8 + $0x20] sm:$0xff] %vm191, %v887
    %899 = vst.msk [vmem:[#allocation8 + $0x28] sm:$0xff] %vm191, %v889
    %900 = vst.msk [vmem:[#allocation8 + $0x30] sm:$0xff] %vm191, %v891
    %901 = vst.msk [vmem:[#allocation8 + $0x38] sm:$0xff] %vm191, %v893
    %902 = vrot.lane.b32.xlu0 %v143, 96
    %v903 = vpop.permute.xlu0 %902
    %v906 = vsel %vm191, %v879, 0
    %908 = vmatprep.subr.mxu0 0.0
    %909 = vmatpush1.msra.mxu0 %v903
    %910 = vmatprep.subr.mxu0 0.0
    %911 = vmatpush1.msra.mxu0 0.0
    %912 = vmatprep.subr.mxu0 0.0
    %913 = vmatpush1.msra.mxu0 0.0
    %914 = vmatprep.subr.mxu0 0.0
    %915 = vmatpush1.msra.mxu0 0.0
    %916 = vmatprep.subr.mxu0 0.0
    %917 = vmatpush1.msra.mxu0 0.0
    %918 = vmatprep.subr.mxu0 0.0
    %919 = vmatpush1.msra.mxu0 0.0
    %920 = vmatprep.subr.mxu0 0.0
    %921 = vmatpush1.msra.mxu0 0.0
    %922 = vmatprep.subr.mxu0 0.0
    %923 = vmatpush1.msra.mxu0 0.0
    %924 = vmatprep.subr.mxu0 0.0
    %925 = vmatpush1.msra.mxu0 0.0
    %926 = vmatprep.subr.mxu0 0.0
    %927 = vmatpush1.msra.mxu0 0.0
    %928 = vmatprep.subr.mxu0 0.0
    %929 = vmatpush1.msra.mxu0 0.0
    %930 = vmatprep.subr.mxu0 0.0
    %931 = vmatpush1.msra.mxu0 0.0
    %932 = vmatprep.subr.mxu0 0.0
    %933 = vmatpush1.msra.mxu0 0.0
    %934 = vmatprep.subr.mxu0 0.0
    %935 = vmatpush1.msra.mxu0 0.0
    %936 = vmatprep.subr.mxu0 0.0
    %937 = vmatpush1.msra.mxu0 0.0
    %938 = vmatprep.subr.mxu0 0.0
    %939 = vmatpush1.msra.mxu0 0.0
    %940 = vmatprep.subr.mxu0 0.0
    %941 = vmatpush1.msra.mxu0 0.0
    %942 = vmatprep.subr.mxu0 0.0
    %943 = vmatpush1.msra.mxu0 0.0
    %944 = vmatprep.subr.mxu0 0.0
    %945 = vmatpush1.msra.mxu0 0.0
    %946 = vmatprep.subr.mxu0 0.0
    %947 = vmatpush1.msra.mxu0 0.0
    %948 = vmatprep.subr.mxu0 0.0
    %949 = vmatpush1.msra.mxu0 0.0
    %950 = vmatprep.subr.mxu0 0.0
    %951 = vmatpush1.msra.mxu0 0.0
    %952 = vmatprep.subr.mxu0 0.0
    %953 = vmatpush1.msra.mxu0 0.0
    %954 = vmatprep.subr.mxu0 0.0
    %955 = vmatpush1.msra.mxu0 0.0
    %956 = vmatprep.subr.mxu0 0.0
    %957 = vmatpush1.msra.mxu0 0.0
    %958 = vmatprep.subr.mxu0 0.0
    %959 = vmatpush1.msra.mxu0 0.0
    %960 = vmatprep.subr.mxu0 0.0
    %961 = vmatpush1.msra.mxu0 0.0
    %962 = vmatprep.subr.mxu0 0.0
    %963 = vmatpush1.msra.mxu0 0.0
    %964 = vmatprep.subr.mxu0 0.0
    %965 = vmatpush1.msra.mxu0 0.0
    %966 = vmatprep.subr.mxu0 0.0
    %967 = vmatpush1.msra.mxu0 0.0
    %968 = vmatprep.subr.mxu0 0.0
    %969 = vmatpush1.msra.mxu0 0.0
    %970 = vmatprep.subr.mxu0 0.0
    %971 = vmatpush1.msra.mxu0 0.0
    %972 = vmatprep.mubr.f32.mxu0 0.0
    %973 = vmatmul.mubr.f32.gmra.mrb[0].mxu0 %v906
    %v974 = vpop.f32.mrb[0].mxu0
    %v975 = vadd.f32 0.0, %v974
    %v976 = vpop.f32.mrb[0].mxu0
    %977 = vdwg.mxu0
    %978 = vrot.lane.b32.xlu0 %v148, 96
    %v979 = vpop.permute.xlu0 %978
    %v982 = vsel %vm191, %v881, 0
    %984 = vmatprep.subr.mxu0 0.0
    %985 = vmatpush1.msra.mxu0 %v979
    %986 = vmatprep.subr.mxu0 0.0
    %987 = vmatpush1.msra.mxu0 0.0
    %988 = vmatprep.subr.mxu0 0.0
    %989 = vmatpush1.msra.mxu0 0.0
    %990 = vmatprep.subr.mxu0 0.0
    %991 = vmatpush1.msra.mxu0 0.0
    %992 = vmatprep.subr.mxu0 0.0
    %993 = vmatpush1.msra.mxu0 0.0
    %994 = vmatprep.subr.mxu0 0.0
    %995 = vmatpush1.msra.mxu0 0.0
    %996 = vmatprep.subr.mxu0 0.0
    %997 = vmatpush1.msra.mxu0 0.0
    %998 = vmatprep.subr.mxu0 0.0
    %999 = vmatpush1.msra.mxu0 0.0
    %1000 = vmatprep.subr.mxu0 0.0
    %1001 = vmatpush1.msra.mxu0 0.0
    %1002 = vmatprep.subr.mxu0 0.0
    %1003 = vmatpush1.msra.mxu0 0.0
    %1004 = vmatprep.subr.mxu0 0.0
    %1005 = vmatpush1.msra.mxu0 0.0
    %1006 = vmatprep.subr.mxu0 0.0
    %1007 = vmatpush1.msra.mxu0 0.0
    %1008 = vmatprep.subr.mxu0 0.0
    %1009 = vmatpush1.msra.mxu0 0.0
    %1010 = vmatprep.subr.mxu0 0.0
    %1011 = vmatpush1.msra.mxu0 0.0
    %1012 = vmatprep.subr.mxu0 0.0
    %1013 = vmatpush1.msra.mxu0 0.0
    %1014 = vmatprep.subr.mxu0 0.0
    %1015 = vmatpush1.msra.mxu0 0.0
    %1016 = vmatprep.subr.mxu0 0.0
    %1017 = vmatpush1.msra.mxu0 0.0
    %1018 = vmatprep.subr.mxu0 0.0
    %1019 = vmatpush1.msra.mxu0 0.0
    %1020 = vmatprep.subr.mxu0 0.0
    %1021 = vmatpush1.msra.mxu0 0.0
    %1022 = vmatprep.subr.mxu0 0.0
    %1023 = vmatpush1.msra.mxu0 0.0
    %1024 = vmatprep.subr.mxu0 0.0
    %1025 = vmatpush1.msra.mxu0 0.0
    %1026 = vmatprep.subr.mxu0 0.0
    %1027 = vmatpush1.msra.mxu0 0.0
    %1028 = vmatprep.subr.mxu0 0.0
    %1029 = vmatpush1.msra.mxu0 0.0
    %1030 = vmatprep.subr.mxu0 0.0
    %1031 = vmatpush1.msra.mxu0 0.0
    %1032 = vmatprep.subr.mxu0 0.0
    %1033 = vmatpush1.msra.mxu0 0.0
    %1034 = vmatprep.subr.mxu0 0.0
    %1035 = vmatpush1.msra.mxu0 0.0
    %1036 = vmatprep.subr.mxu0 0.0
    %1037 = vmatpush1.msra.mxu0 0.0
    %1038 = vmatprep.subr.mxu0 0.0
    %1039 = vmatpush1.msra.mxu0 0.0
    %1040 = vmatprep.subr.mxu0 0.0
    %1041 = vmatpush1.msra.mxu0 0.0
    %1042 = vmatprep.subr.mxu0 0.0
    %1043 = vmatpush1.msra.mxu0 0.0
    %1044 = vmatprep.subr.mxu0 0.0
    %1045 = vmatpush1.msra.mxu0 0.0
    %1046 = vmatprep.subr.mxu0 0.0
    %1047 = vmatpush1.msra.mxu0 0.0
    %1048 = vmatprep.mubr.f32.mxu0 0.0
    %1049 = vmatmul.mubr.f32.gmra.mrb[0].mxu0 %v982
    %v1050 = vpop.f32.mrb[0].mxu0
    %v1051 = vadd.f32 0.0, %v1050
    %v1052 = vpop.f32.mrb[0].mxu0
    %1053 = vdwg.mxu0
    %1054 = vrot.lane.b32.xlu0 %v164, 96
    %v1055 = vpop.permute.xlu0 %1054
    %v1058 = vsel %vm191, %v883, 0
    %1060 = vmatprep.subr.mxu0 0.0
    %1061 = vmatpush1.msra.mxu0 %v1055
    %1062 = vmatprep.subr.mxu0 0.0
    %1063 = vmatpush1.msra.mxu0 0.0
    %1064 = vmatprep.subr.mxu0 0.0
    %1065 = vmatpush1.msra.mxu0 0.0
    %1066 = vmatprep.subr.mxu0 0.0
    %1067 = vmatpush1.msra.mxu0 0.0
    %1068 = vmatprep.subr.mxu0 0.0
    %1069 = vmatpush1.msra.mxu0 0.0
    %1070 = vmatprep.subr.mxu0 0.0
    %1071 = vmatpush1.msra.mxu0 0.0
    %1072 = vmatprep.subr.mxu0 0.0
    %1073 = vmatpush1.msra.mxu0 0.0
    %1074 = vmatprep.subr.mxu0 0.0
    %1075 = vmatpush1.msra.mxu0 0.0
    %1076 = vmatprep.subr.mxu0 0.0
    %1077 = vmatpush1.msra.mxu0 0.0
    %1078 = vmatprep.subr.mxu0 0.0
    %1079 = vmatpush1.msra.mxu0 0.0
    %1080 = vmatprep.subr.mxu0 0.0
    %1081 = vmatpush1.msra.mxu0 0.0
    %1082 = vmatprep.subr.mxu0 0.0
    %1083 = vmatpush1.msra.mxu0 0.0
    %1084 = vmatprep.subr.mxu0 0.0
    %1085 = vmatpush1.msra.mxu0 0.0
    %1086 = vmatprep.subr.mxu0 0.0
    %1087 = vmatpush1.msra.mxu0 0.0
    %1088 = vmatprep.subr.mxu0 0.0
    %1089 = vmatpush1.msra.mxu0 0.0
    %1090 = vmatprep.subr.mxu0 0.0
    %1091 = vmatpush1.msra.mxu0 0.0
    %1092 = vmatprep.subr.mxu0 0.0
    %1093 = vmatpush1.msra.mxu0 0.0
    %1094 = vmatprep.subr.mxu0 0.0
    %1095 = vmatpush1.msra.mxu0 0.0
    %1096 = vmatprep.subr.mxu0 0.0
    %1097 = vmatpush1.msra.mxu0 0.0
    %1098 = vmatprep.subr.mxu0 0.0
    %1099 = vmatpush1.msra.mxu0 0.0
    %1100 = vmatprep.subr.mxu0 0.0
    %1101 = vmatpush1.msra.mxu0 0.0
    %1102 = vmatprep.subr.mxu0 0.0
    %1103 = vmatpush1.msra.mxu0 0.0
    %1104 = vmatprep.subr.mxu0 0.0
    %1105 = vmatpush1.msra.mxu0 0.0
    %1106 = vmatprep.subr.mxu0 0.0
    %1107 = vmatpush1.msra.mxu0 0.0
    %1108 = vmatprep.subr.mxu0 0.0
    %1109 = vmatpush1.msra.mxu0 0.0
    %1110 = vmatprep.subr.mxu0 0.0
    %1111 = vmatpush1.msra.mxu0 0.0
    %1112 = vmatprep.subr.mxu0 0.0
    %1113 = vmatpush1.msra.mxu0 0.0
    %1114 = vmatprep.subr.mxu0 0.0
    %1115 = vmatpush1.msra.mxu0 0.0
    %1116 = vmatprep.subr.mxu0 0.0
    %1117 = vmatpush1.msra.mxu0 0.0
    %1118 = vmatprep.subr.mxu0 0.0
    %1119 = vmatpush1.msra.mxu0 0.0
    %1120 = vmatprep.subr.mxu0 0.0
    %1121 = vmatpush1.msra.mxu0 0.0
    %1122 = vmatprep.subr.mxu0 0.0
    %1123 = vmatpush1.msra.mxu0 0.0
    %1124 = vmatprep.mubr.f32.mxu0 0.0
    %1125 = vmatmul.mubr.f32.gmra.mrb[0].mxu0 %v1058
    %v1126 = vpop.f32.mrb[0].mxu0
    %v1127 = vadd.f32 0.0, %v1126
    %v1128 = vpop.f32.mrb[0].mxu0
    %1129 = vdwg.mxu0
    %1130 = vrot.lane.b32.xlu0 %v166, 96
    %v1131 = vpop.permute.xlu0 %1130
    %v1134 = vsel %vm191, %v885, 0
    %1136 = vmatprep.subr.mxu0 0.0
    %1137 = vmatpush1.msra.mxu0 %v1131
    %1138 = vmatprep.subr.mxu0 0.0
    %1139 = vmatpush1.msra.mxu0 0.0
    %1140 = vmatprep.subr.mxu0 0.0
    %1141 = vmatpush1.msra.mxu0 0.0
    %1142 = vmatprep.subr.mxu0 0.0
    %1143 = vmatpush1.msra.mxu0 0.0
    %1144 = vmatprep.subr.mxu0 0.0
    %1145 = vmatpush1.msra.mxu0 0.0
    %1146 = vmatprep.subr.mxu0 0.0
    %1147 = vmatpush1.msra.mxu0 0.0
    %1148 = vmatprep.subr.mxu0 0.0
    %1149 = vmatpush1.msra.mxu0 0.0
    %1150 = vmatprep.subr.mxu0 0.0
    %1151 = vmatpush1.msra.mxu0 0.0
    %1152 = vmatprep.subr.mxu0 0.0
    %1153 = vmatpush1.msra.mxu0 0.0
    %1154 = vmatprep.subr.mxu0 0.0
    %1155 = vmatpush1.msra.mxu0 0.0
    %1156 = vmatprep.subr.mxu0 0.0
    %1157 = vmatpush1.msra.mxu0 0.0
    %1158 = vmatprep.subr.mxu0 0.0
    %1159 = vmatpush1.msra.mxu0 0.0
    %1160 = vmatprep.subr.mxu0 0.0
    %1161 = vmatpush1.msra.mxu0 0.0
    %1162 = vmatprep.subr.mxu0 0.0
    %1163 = vmatpush1.msra.mxu0 0.0
    %1164 = vmatprep.subr.mxu0 0.0
    %1165 = vmatpush1.msra.mxu0 0.0
    %1166 = vmatprep.subr.mxu0 0.0
    %1167 = vmatpush1.msra.mxu0 0.0
    %1168 = vmatprep.subr.mxu0 0.0
    %1169 = vmatpush1.msra.mxu0 0.0
    %1170 = vmatprep.subr.mxu0 0.0
    %1171 = vmatpush1.msra.mxu0 0.0
    %1172 = vmatprep.subr.mxu0 0.0
    %1173 = vmatpush1.msra.mxu0 0.0
    %1174 = vmatprep.subr.mxu0 0.0
    %1175 = vmatpush1.msra.mxu0 0.0
    %1176 = vmatprep.subr.mxu0 0.0
    %1177 = vmatpush1.msra.mxu0 0.0
    %1178 = vmatprep.subr.mxu0 0.0
    %1179 = vmatpush1.msra.mxu0 0.0
    %1180 = vmatprep.subr.mxu0 0.0
    %1181 = vmatpush1.msra.mxu0 0.0
    %1182 = vmatprep.subr.mxu0 0.0
    %1183 = vmatpush1.msra.mxu0 0.0
    %1184 = vmatprep.subr.mxu0 0.0
    %1185 = vmatpush1.msra.mxu0 0.0
    %1186 = vmatprep.subr.mxu0 0.0
    %1187 = vmatpush1.msra.mxu0 0.0
    %1188 = vmatprep.subr.mxu0 0.0
    %1189 = vmatpush1.msra.mxu0 0.0
    %1190 = vmatprep.subr.mxu0 0.0
    %1191 = vmatpush1.msra.mxu0 0.0
    %1192 = vmatprep.subr.mxu0 0.0
    %1193 = vmatpush1.msra.mxu0 0.0
    %1194 = vmatprep.subr.mxu0 0.0
    %1195 = vmatpush1.msra.mxu0 0.0
    %1196 = vmatprep.subr.mxu0 0.0
    %1197 = vmatpush1.msra.mxu0 0.0
    %1198 = vmatprep.subr.mxu0 0.0
    %1199 = vmatpush1.msra.mxu0 0.0
    %1200 = vmatprep.mubr.f32.mxu0 0.0
    %1201 = vmatmul.mubr.f32.gmra.mrb[0].mxu0 %v1134
    %v1202 = vpop.f32.mrb[0].mxu0
    %v1203 = vadd.f32 0.0, %v1202
    %v1204 = vpop.f32.mrb[0].mxu0
    %1205 = vdwg.mxu0
    %1206 = vrot.lane.b32.xlu0 %v168, 96
    %v1207 = vpop.permute.xlu0 %1206
    %v1210 = vsel %vm191, %v887, 0
    %1212 = vmatprep.subr.mxu0 0.0
    %1213 = vmatpush1.msra.mxu0 %v1207
    %1214 = vmatprep.subr.mxu0 0.0
    %1215 = vmatpush1.msra.mxu0 0.0
    %1216 = vmatprep.subr.mxu0 0.0
    %1217 = vmatpush1.msra.mxu0 0.0
    %1218 = vmatprep.subr.mxu0 0.0
    %1219 = vmatpush1.msra.mxu0 0.0
    %1220 = vmatprep.subr.mxu0 0.0
    %1221 = vmatpush1.msra.mxu0 0.0
    %1222 = vmatprep.subr.mxu0 0.0
    %1223 = vmatpush1.msra.mxu0 0.0
    %1224 = vmatprep.subr.mxu0 0.0
    %1225 = vmatpush1.msra.mxu0 0.0
    %1226 = vmatprep.subr.mxu0 0.0
    %1227 = vmatpush1.msra.mxu0 0.0
    %1228 = vmatprep.subr.mxu0 0.0
    %1229 = vmatpush1.msra.mxu0 0.0
    %1230 = vmatprep.subr.mxu0 0.0
    %1231 = vmatpush1.msra.mxu0 0.0
    %1232 = vmatprep.subr.mxu0 0.0
    %1233 = vmatpush1.msra.mxu0 0.0
    %1234 = vmatprep.subr.mxu0 0.0
    %1235 = vmatpush1.msra.mxu0 0.0
    %1236 = vmatprep.subr.mxu0 0.0
    %1237 = vmatpush1.msra.mxu0 0.0
    %1238 = vmatprep.subr.mxu0 0.0
    %1239 = vmatpush1.msra.mxu0 0.0
    %1240 = vmatprep.subr.mxu0 0.0
    %1241 = vmatpush1.msra.mxu0 0.0
    %1242 = vmatprep.subr.mxu0 0.0
    %1243 = vmatpush1.msra.mxu0 0.0
    %1244 = vmatprep.subr.mxu0 0.0
    %1245 = vmatpush1.msra.mxu0 0.0
    %1246 = vmatprep.subr.mxu0 0.0
    %1247 = vmatpush1.msra.mxu0 0.0
    %1248 = vmatprep.subr.mxu0 0.0
    %1249 = vmatpush1.msra.mxu0 0.0
    %1250 = vmatprep.subr.mxu0 0.0
    %1251 = vmatpush1.msra.mxu0 0.0
    %1252 = vmatprep.subr.mxu0 0.0
    %1253 = vmatpush1.msra.mxu0 0.0
    %1254 = vmatprep.subr.mxu0 0.0
    %1255 = vmatpush1.msra.mxu0 0.0
    %1256 = vmatprep.subr.mxu0 0.0
    %1257 = vmatpush1.msra.mxu0 0.0
    %1258 = vmatprep.subr.mxu0 0.0
    %1259 = vmatpush1.msra.mxu0 0.0
    %1260 = vmatprep.subr.mxu0 0.0
    %1261 = vmatpush1.msra.mxu0 0.0
    %1262 = vmatprep.subr.mxu0 0.0
    %1263 = vmatpush1.msra.mxu0 0.0
    %1264 = vmatprep.subr.mxu0 0.0
    %1265 = vmatpush1.msra.mxu0 0.0
    %1266 = vmatprep.subr.mxu0 0.0
    %1267 = vmatpush1.msra.mxu0 0.0
    %1268 = vmatprep.subr.mxu0 0.0
    %1269 = vmatpush1.msra.mxu0 0.0
    %1270 = vmatprep.subr.mxu0 0.0
    %1271 = vmatpush1.msra.mxu0 0.0
    %1272 = vmatprep.subr.mxu0 0.0
    %1273 = vmatpush1.msra.mxu0 0.0
    %1274 = vmatprep.subr.mxu0 0.0
    %1275 = vmatpush1.msra.mxu0 0.0
    %1276 = vmatprep.mubr.f32.mxu0 0.0
    %1277 = vmatmul.mubr.f32.gmra.mrb[0].mxu0 %v1210
    %v1278 = vpop.f32.mrb[0].mxu0
    %v1279 = vadd.f32 0.0, %v1278
    %v1280 = vpop.f32.mrb[0].mxu0
    %1281 = vdwg.mxu0
    %1282 = vrot.lane.b32.xlu0 %v170, 96
    %v1283 = vpop.permute.xlu0 %1282
    %v1286 = vsel %vm191, %v889, 0
    %1288 = vmatprep.subr.mxu0 0.0
    %1289 = vmatpush1.msra.mxu0 %v1283
    %1290 = vmatprep.subr.mxu0 0.0
    %1291 = vmatpush1.msra.mxu0 0.0
    %1292 = vmatprep.subr.mxu0 0.0
    %1293 = vmatpush1.msra.mxu0 0.0
    %1294 = vmatprep.subr.mxu0 0.0
    %1295 = vmatpush1.msra.mxu0 0.0
    %1296 = vmatprep.subr.mxu0 0.0
    %1297 = vmatpush1.msra.mxu0 0.0
    %1298 = vmatprep.subr.mxu0 0.0
    %1299 = vmatpush1.msra.mxu0 0.0
    %1300 = vmatprep.subr.mxu0 0.0
    %1301 = vmatpush1.msra.mxu0 0.0
    %1302 = vmatprep.subr.mxu0 0.0
    %1303 = vmatpush1.msra.mxu0 0.0
    %1304 = vmatprep.subr.mxu0 0.0
    %1305 = vmatpush1.msra.mxu0 0.0
    %1306 = vmatprep.subr.mxu0 0.0
    %1307 = vmatpush1.msra.mxu0 0.0
    %1308 = vmatprep.subr.mxu0 0.0
    %1309 = vmatpush1.msra.mxu0 0.0
    %1310 = vmatprep.subr.mxu0 0.0
    %1311 = vmatpush1.msra.mxu0 0.0
    %1312 = vmatprep.subr.mxu0 0.0
    %1313 = vmatpush1.msra.mxu0 0.0
    %1314 = vmatprep.subr.mxu0 0.0
    %1315 = vmatpush1.msra.mxu0 0.0
    %1316 = vmatprep.subr.mxu0 0.0
    %1317 = vmatpush1.msra.mxu0 0.0
    %1318 = vmatprep.subr.mxu0 0.0
    %1319 = vmatpush1.msra.mxu0 0.0
    %1320 = vmatprep.subr.mxu0 0.0
    %1321 = vmatpush1.msra.mxu0 0.0
    %1322 = vmatprep.subr.mxu0 0.0
    %1323 = vmatpush1.msra.mxu0 0.0
    %1324 = vmatprep.subr.mxu0 0.0
    %1325 = vmatpush1.msra.mxu0 0.0
    %1326 = vmatprep.subr.mxu0 0.0
    %1327 = vmatpush1.msra.mxu0 0.0
    %1328 = vmatprep.subr.mxu0 0.0
    %1329 = vmatpush1.msra.mxu0 0.0
    %1330 = vmatprep.subr.mxu0 0.0
    %1331 = vmatpush1.msra.mxu0 0.0
    %1332 = vmatprep.subr.mxu0 0.0
    %1333 = vmatpush1.msra.mxu0 0.0
    %1334 = vmatprep.subr.mxu0 0.0
    %1335 = vmatpush1.msra.mxu0 0.0
    %1336 = vmatprep.subr.mxu0 0.0
    %1337 = vmatpush1.msra.mxu0 0.0
    %1338 = vmatprep.subr.mxu0 0.0
    %1339 = vmatpush1.msra.mxu0 0.0
    %1340 = vmatprep.subr.mxu0 0.0
    %1341 = vmatpush1.msra.mxu0 0.0
    %1342 = vmatprep.subr.mxu0 0.0
    %1343 = vmatpush1.msra.mxu0 0.0
    %1344 = vmatprep.subr.mxu0 0.0
    %1345 = vmatpush1.msra.mxu0 0.0
    %1346 = vmatprep.subr.mxu0 0.0
    %1347 = vmatpush1.msra.mxu0 0.0
    %1348 = vmatprep.subr.mxu0 0.0
    %1349 = vmatpush1.msra.mxu0 0.0
    %1350 = vmatprep.subr.mxu0 0.0
    %1351 = vmatpush1.msra.mxu0 0.0
    %1352 = vmatprep.mubr.f32.mxu0 0.0
    %1353 = vmatmul.mubr.f32.gmra.mrb[0].mxu0 %v1286
    %v1354 = vpop.f32.mrb[0].mxu0
    %v1355 = vadd.f32 0.0, %v1354
    %v1356 = vpop.f32.mrb[0].mxu0
    %1357 = vdwg.mxu0
    %1358 = vrot.lane.b32.xlu0 %v172, 96
    %v1359 = vpop.permute.xlu0 %1358
    %v1362 = vsel %vm191, %v891, 0
    %1364 = vmatprep.subr.mxu0 0.0
    %1365 = vmatpush1.msra.mxu0 %v1359
    %1366 = vmatprep.subr.mxu0 0.0
    %1367 = vmatpush1.msra.mxu0 0.0
    %1368 = vmatprep.subr.mxu0 0.0
    %1369 = vmatpush1.msra.mxu0 0.0
    %1370 = vmatprep.subr.mxu0 0.0
    %1371 = vmatpush1.msra.mxu0 0.0
    %1372 = vmatprep.subr.mxu0 0.0
    %1373 = vmatpush1.msra.mxu0 0.0
    %1374 = vmatprep.subr.mxu0 0.0
    %1375 = vmatpush1.msra.mxu0 0.0
    %1376 = vmatprep.subr.mxu0 0.0
    %1377 = vmatpush1.msra.mxu0 0.0
    %1378 = vmatprep.subr.mxu0 0.0
    %1379 = vmatpush1.msra.mxu0 0.0
    %1380 = vmatprep.subr.mxu0 0.0
    %1381 = vmatpush1.msra.mxu0 0.0
    %1382 = vmatprep.subr.mxu0 0.0
    %1383 = vmatpush1.msra.mxu0 0.0
    %1384 = vmatprep.subr.mxu0 0.0
    %1385 = vmatpush1.msra.mxu0 0.0
    %1386 = vmatprep.subr.mxu0 0.0
    %1387 = vmatpush1.msra.mxu0 0.0
    %1388 = vmatprep.subr.mxu0 0.0
    %1389 = vmatpush1.msra.mxu0 0.0
    %1390 = vmatprep.subr.mxu0 0.0
    %1391 = vmatpush1.msra.mxu0 0.0
    %1392 = vmatprep.subr.mxu0 0.0
    %1393 = vmatpush1.msra.mxu0 0.0
    %1394 = vmatprep.subr.mxu0 0.0
    %1395 = vmatpush1.msra.mxu0 0.0
    %1396 = vmatprep.subr.mxu0 0.0
    %1397 = vmatpush1.msra.mxu0 0.0
    %1398 = vmatprep.subr.mxu0 0.0
    %1399 = vmatpush1.msra.mxu0 0.0
    %1400 = vmatprep.subr.mxu0 0.0
    %1401 = vmatpush1.msra.mxu0 0.0
    %1402 = vmatprep.subr.mxu0 0.0
    %1403 = vmatpush1.msra.mxu0 0.0
    %1404 = vmatprep.subr.mxu0 0.0
    %1405 = vmatpush1.msra.mxu0 0.0
    %1406 = vmatprep.subr.mxu0 0.0
    %1407 = vmatpush1.msra.mxu0 0.0
    %1408 = vmatprep.subr.mxu0 0.0
    %1409 = vmatpush1.msra.mxu0 0.0
    %1410 = vmatprep.subr.mxu0 0.0
    %1411 = vmatpush1.msra.mxu0 0.0
    %1412 = vmatprep.subr.mxu0 0.0
    %1413 = vmatpush1.msra.mxu0 0.0
    %1414 = vmatprep.subr.mxu0 0.0
    %1415 = vmatpush1.msra.mxu0 0.0
    %1416 = vmatprep.subr.mxu0 0.0
    %1417 = vmatpush1.msra.mxu0 0.0
    %1418 = vmatprep.subr.mxu0 0.0
    %1419 = vmatpush1.msra.mxu0 0.0
    %1420 = vmatprep.subr.mxu0 0.0
    %1421 = vmatpush1.msra.mxu0 0.0
    %1422 = vmatprep.subr.mxu0 0.0
    %1423 = vmatpush1.msra.mxu0 0.0
    %1424 = vmatprep.subr.mxu0 0.0
    %1425 = vmatpush1.msra.mxu0 0.0
    %1426 = vmatprep.subr.mxu0 0.0
    %1427 = vmatpush1.msra.mxu0 0.0
    %1428 = vmatprep.mubr.f32.mxu0 0.0
    %1429 = vmatmul.mubr.f32.gmra.mrb[0].mxu0 %v1362
    %v1430 = vpop.f32.mrb[0].mxu0
    %v1431 = vadd.f32 0.0, %v1430
    %v1432 = vpop.f32.mrb[0].mxu0
    %1433 = vdwg.mxu0
    %1434 = vrot.lane.b32.xlu0 %v174, 96
    %v1435 = vpop.permute.xlu0 %1434
    %v1438 = vsel %vm191, %v893, 0
    %1440 = vmatprep.subr.mxu0 0.0
    %1441 = vmatpush1.msra.mxu0 %v1435
    %1442 = vmatprep.subr.mxu0 0.0
    %1443 = vmatpush1.msra.mxu0 0.0
    %1444 = vmatprep.subr.mxu0 0.0
    %1445 = vmatpush1.msra.mxu0 0.0
    %1446 = vmatprep.subr.mxu0 0.0
    %1447 = vmatpush1.msra.mxu0 0.0
    %1448 = vmatprep.subr.mxu0 0.0
    %1449 = vmatpush1.msra.mxu0 0.0
    %1450 = vmatprep.subr.mxu0 0.0
    %1451 = vmatpush1.msra.mxu0 0.0
    %1452 = vmatprep.subr.mxu0 0.0
    %1453 = vmatpush1.msra.mxu0 0.0
    %1454 = vmatprep.subr.mxu0 0.0
    %1455 = vmatpush1.msra.mxu0 0.0
    %1456 = vmatprep.subr.mxu0 0.0
    %1457 = vmatpush1.msra.mxu0 0.0
    %1458 = vmatprep.subr.mxu0 0.0
    %1459 = vmatpush1.msra.mxu0 0.0
    %1460 = vmatprep.subr.mxu0 0.0
    %1461 = vmatpush1.msra.mxu0 0.0
    %1462 = vmatprep.subr.mxu0 0.0
    %1463 = vmatpush1.msra.mxu0 0.0
    %1464 = vmatprep.subr.mxu0 0.0
    %1465 = vmatpush1.msra.mxu0 0.0
    %1466 = vmatprep.subr.mxu0 0.0
    %1467 = vmatpush1.msra.mxu0 0.0
    %1468 = vmatprep.subr.mxu0 0.0
    %1469 = vmatpush1.msra.mxu0 0.0
    %1470 = vmatprep.subr.mxu0 0.0
    %1471 = vmatpush1.msra.mxu0 0.0
    %1472 = vmatprep.subr.mxu0 0.0
    %1473 = vmatpush1.msra.mxu0 0.0
    %1474 = vmatprep.subr.mxu0 0.0
    %1475 = vmatpush1.msra.mxu0 0.0
    %1476 = vmatprep.subr.mxu0 0.0
    %1477 = vmatpush1.msra.mxu0 0.0
    %1478 = vmatprep.subr.mxu0 0.0
    %1479 = vmatpush1.msra.mxu0 0.0
    %1480 = vmatprep.subr.mxu0 0.0
    %1481 = vmatpush1.msra.mxu0 0.0
    %1482 = vmatprep.subr.mxu0 0.0
    %1483 = vmatpush1.msra.mxu0 0.0
    %1484 = vmatprep.subr.mxu0 0.0
    %1485 = vmatpush1.msra.mxu0 0.0
    %1486 = vmatprep.subr.mxu0 0.0
    %1487 = vmatpush1.msra.mxu0 0.0
    %1488 = vmatprep.subr.mxu0 0.0
    %1489 = vmatpush1.msra.mxu0 0.0
    %1490 = vmatprep.subr.mxu0 0.0
    %1491 = vmatpush1.msra.mxu0 0.0
    %1492 = vmatprep.subr.mxu0 0.0
    %1493 = vmatpush1.msra.mxu0 0.0
    %1494 = vmatprep.subr.mxu0 0.0
    %1495 = vmatpush1.msra.mxu0 0.0
    %1496 = vmatprep.subr.mxu0 0.0
    %1497 = vmatpush1.msra.mxu0 0.0
    %1498 = vmatprep.subr.mxu0 0.0
    %1499 = vmatpush1.msra.mxu0 0.0
    %1500 = vmatprep.subr.mxu0 0.0
    %1501 = vmatpush1.msra.mxu0 0.0
    %1502 = vmatprep.subr.mxu0 0.0
    %1503 = vmatpush1.msra.mxu0 0.0
    %1504 = vmatprep.mubr.f32.mxu0 0.0
    %1505 = vmatmul.mubr.f32.gmra.mrb[0].mxu0 %v1438
    %v1506 = vpop.f32.mrb[0].mxu0
    %v1507 = vadd.f32 0.0, %v1506
    %v1508 = vpop.f32.mrb[0].mxu0
    %1509 = vdwg.mxu0
    %1512 = vrot.lane.b32.xlu0 %v975, 32
    %v1513 = vpop.permute.xlu0 %1512
    %1514 = vrot.lane.b32.xlu0 %v1051, 32
    %v1515 = vpop.permute.xlu0 %1514
    %1520 = vrot.lane.b32.xlu0 %v1127, 40
    %v1521 = vpop.permute.xlu0 %1520
    %1522 = vrot.lane.b32.xlu0 %v1203, 40
    %v1523 = vpop.permute.xlu0 %1522
    %1528 = vrot.lane.b32.xlu0 %v1279, 48
    %v1529 = vpop.permute.xlu0 %1528
    %1530 = vrot.lane.b32.xlu0 %v1355, 48
    %v1531 = vpop.permute.xlu0 %1530
    %1536 = vrot.lane.b32.xlu0 %v1431, 56
    %v1537 = vpop.permute.xlu0 %1536
    %1538 = vrot.lane.b32.xlu0 %v1507, 56
    %v1539 = vpop.permute.xlu0 %1538
    %v1542 = vsel %vm63, %v48, %v1513
    %v1543 = vsel %vm63, %v49, %v1515
    %vm1544 = vcmask 326656
    %v1545 = vsel %vm1544, %v1542, %v1521
    %v1546 = vsel %vm1544, %v1543, %v1523
    %vm1547 = vcmask 392192
    %v1548 = vsel %vm1547, %v1545, %v1529
    %v1549 = vsel %vm1547, %v1546, %v1531
    %vm1550 = vcmask 457728
    %v1551 = vsel %vm1550, %v1548, %v1537
    %v1552 = vsel %vm1550, %v1549, %v1539
    %v1553 = vlaneseq
    %v1554 = vshrl.u32 %v1553, 7
    %v1555 = vsub.s32 0, %v1554
    %v1556 = vrot.slane %v62, %v1555
    %vm1557 = vcmask 523264
    %v1559 = vsel %vm1557, %v1551, 0
    %v1562 = vsel %vm1557, %v1552, 0
    %1564 = vmatprep.subr.mxu0 0.0
    %1565 = vmatpush1.msra.mxu0 %v54
    %1566 = vmatprep.subr.mxu0 0.0
    %1567 = vmatpush1.msra.mxu0 %v55
    %1568 = vmatprep.subr.mxu0 0.0
    %1569 = vmatpush1.msra.mxu0 %v56
    %1570 = vmatprep.subr.mxu0 0.0
    %1571 = vmatpush1.msra.mxu0 %v57
    %1572 = vmatprep.subr.mxu0 0.0
    %1573 = vmatpush1.msra.mxu0 %v58
    %1574 = vmatprep.subr.mxu0 0.0
    %1575 = vmatpush1.msra.mxu0 %v59
    %1576 = vmatprep.subr.mxu0 0.0
    %1577 = vmatpush1.msra.mxu0 %v60
    %1578 = vmatprep.subr.mxu0 0.0
    %1579 = vmatpush1.msra.mxu0 %v61
    %1580 = vmatprep.subr.mxu0 0.0
    %1581 = vmatpush1.msra.mxu0 0.0
    %1582 = vmatprep.subr.mxu0 0.0
    %1583 = vmatpush1.msra.mxu0 0.0
    %1584 = vmatprep.subr.mxu0 0.0
    %1585 = vmatpush1.msra.mxu0 0.0
    %1586 = vmatprep.subr.mxu0 0.0
    %1587 = vmatpush1.msra.mxu0 0.0
    %1588 = vmatprep.subr.mxu0 0.0
    %1589 = vmatpush1.msra.mxu0 0.0
    %1590 = vmatprep.subr.mxu0 0.0
    %1591 = vmatpush1.msra.mxu0 0.0
    %1592 = vmatprep.subr.mxu0 0.0
    %1593 = vmatpush1.msra.mxu0 0.0
    %1594 = vmatprep.subr.mxu0 0.0
    %1595 = vmatpush1.msra.mxu0 0.0
    %1596 = vmatprep.subr.mxu0 0.0
    %1597 = vmatpush1.msra.mxu0 0.0
    %1598 = vmatprep.subr.mxu0 0.0
    %1599 = vmatpush1.msra.mxu0 0.0
    %1600 = vmatprep.subr.mxu0 0.0
    %1601 = vmatpush1.msra.mxu0 0.0
    %1602 = vmatprep.subr.mxu0 0.0
    %1603 = vmatpush1.msra.mxu0 0.0
    %1604 = vmatprep.subr.mxu0 0.0
    %1605 = vmatpush1.msra.mxu0 0.0
    %1606 = vmatprep.subr.mxu0 0.0
    %1607 = vmatpush1.msra.mxu0 0.0
    %1608 = vmatprep.subr.mxu0 0.0
    %1609 = vmatpush1.msra.mxu0 0.0
    %1610 = vmatprep.subr.mxu0 0.0
    %1611 = vmatpush1.msra.mxu0 0.0
    %1612 = vmatprep.subr.mxu0 0.0
    %1613 = vmatpush1.msra.mxu0 0.0
    %1614 = vmatprep.subr.mxu0 0.0
    %1615 = vmatpush1.msra.mxu0 0.0
    %1616 = vmatprep.subr.mxu0 0.0
    %1617 = vmatpush1.msra.mxu0 0.0
    %1618 = vmatprep.subr.mxu0 0.0
    %1619 = vmatpush1.msra.mxu0 0.0
    %1620 = vmatprep.subr.mxu0 0.0
    %1621 = vmatpush1.msra.mxu0 0.0
    %1622 = vmatprep.subr.mxu0 0.0
    %1623 = vmatpush1.msra.mxu0 0.0
    %1624 = vmatprep.subr.mxu0 0.0
    %1625 = vmatpush1.msra.mxu0 0.0
    %1626 = vmatprep.subr.mxu0 0.0
    %1627 = vmatpush1.msra.mxu0 0.0
    %1628 = vmatprep.mubr.f32.mxu0 0.0
    %1629 = vmatmul.mubr.f32.gmra.mrb[0].mxu0 %v1559
    %v1630 = vpop.f32.mrb[0].mxu0
    %v1631 = vadd.f32 %v1556, %v1630
    %v1632 = vpop.f32.mrb[0].mxu0
    %1633 = vmatprep.mubr.f32.mxu0 0.0
    %1634 = vmatmul.mubr.f32.gmra.mrb[0].mxu0 %v1562
    %v1635 = vpop.f32.mrb[0].mxu0
    %v1636 = vadd.f32 %v1556, %v1635
    %v1637 = vpop.f32.mrb[0].mxu0
    %1638 = vdwg.mxu0
    %v1639 = vadd.f32 %v1631, %v48
    %v1640 = vadd.f32 %v1636, %v49
    %v1641 = vsel %vm63, %v1639, 0.0
    %1642 = vadd.xlane.f32.xlu0 %v1641
    %v1643 = vpop.xlane.xlu0 %1642
    %v1644 = vsel %vm63, %v1640, 0.0
    %1645 = vadd.xlane.f32.xlu0 %v1644
    %v1646 = vpop.xlane.xlu0 %1645
    %v1647 = vrcp.pop 32.0
    %v1648 = vmul.f32 %v1643, %v1647
    %v1649 = vmul.f32 %v1646, %v1647
    %v1650 = vsub.f32 %v1639, %v1648
    %v1651 = vsub.f32 %v1640, %v1649
    %v1652 = vmul.f32 %v1650, %v1650
    %v1653 = vmul.f32 %v1651, %v1651
    %v1654 = vsel %vm63, %v1652, 0.0
    %1655 = vadd.xlane.f32.xlu0 %v1654
    %v1656 = vpop.xlane.xlu0 %1655
    %v1657 = vsel %vm63, %v1653, 0.0
    %1658 = vadd.xlane.f32.xlu0 %v1657
    %v1659 = vpop.xlane.xlu0 %1658
    %v1660 = vmul.f32 %v1656, %v1647
    %v1661 = vmul.f32 %v1659, %v1647
    %v1662 = vadd.f32 %v1660, 1e-05
    %v1663 = vadd.f32 %v1661, 1e-05
    %v1664 = vrsqrt.pop %v1662
    %v1665 = vrsqrt.pop %v1663
    %v1666 = vmul.f32 %v1650, %v1664
    %v1667 = vmul.f32 %v1651, %v1665
    %v1668 = vlaneseq
    %v1669 = vshrl.u32 %v1668, 7
    %v1670 = vsub.s32 1, %v1669
    %v1671 = vrot.slane %v62, %v1670
    %v1672 = vmul.f32 %v1666, %v1671
    %v1673 = vmul.f32 %v1667, %v1671
    %v1674 = vlaneseq
    %v1675 = vshrl.u32 %v1674, 7
    %v1676 = vsub.s32 2, %v1675
    %v1677 = vrot.slane %v62, %v1676
    %v1678 = vadd.f32 %v1672, %v1677
    %v1679 = vadd.f32 %v1673, %v1677
    %1680 = vst.msk [vmem:[#allocation7] sm:$0xff] %vm63, %v1678
    %1681 = vst.msk [vmem:[#allocation7 + $0x8] sm:$0xff] %vm63, %v1679
    // Predicated region
    $region22: #{tpu_custom_call.1} parent=1 // pred_check
      _
    $region23: #{tpu_custom_call.1} parent=1 // pred_check_branch
      %1683 = sbr.rel (0) target = $region25
    $region24: #{tpu_custom_call.1} parent=1 // pred_region
      %s1685 = ssub.s32 256, 256
      %1686 = vsyncadd [#allocation4], %s1685
      %s1687 = sshll.u32 [#allocation7], 4
      %s1688 = int_to_ptr.vmem [resolvable:$true] %s1687
      %1693 = dma.vmem_to_hbm [thread:$0]  %s1688, 256, %s3, [#allocation4], 128, 128, 8
    $region25: #{tpu_custom_call.1} parent=1 // pred_fallthru
      _
    // Predicated region
    $region26: #{tpu_custom_call.1} parent=1 // pred_check
      _
    $region27: #{tpu_custom_call.1} parent=1 // pred_check_branch
      %1695 = sbr.rel (0) target = $region29
    $region28: #{tpu_custom_call.1} parent=1 // pred_region
      %s1697 = ssub.s32 1024, 1024
      %1698 = vsyncadd [#allocation9], %s1697
      %s1699 = sshll.u32 [#allocation8], 4
      %s1700 = int_to_ptr.vmem [resolvable:$true] %s1699
      %1705 = dma.vmem_to_hbm [thread:$0]  %s1700, 1024, %s4, [#allocation9], 128, 128, 8
    $region29: #{tpu_custom_call.1} parent=1 // pred_fallthru
      _
    // Predicated region
    $region30: #{tpu_custom_call.1} parent=1 // pred_check
      _
    $region31: #{tpu_custom_call.1} parent=1 // pred_check_branch
      %1707 = sbr.rel (0) target = $region33
    $region32: #{tpu_custom_call.1} parent=1 // pred_region
      %1708 = dma.done [#allocation4], 256
    $region33: #{tpu_custom_call.1} parent=1 // pred_fallthru
      _
    // Predicated region
    $region34: #{tpu_custom_call.1} parent=1 // pred_check
      _
    $region35: #{tpu_custom_call.1} parent=1 // pred_check_branch
      %1710 = sbr.rel (0) target = $region37
    $region36: #{tpu_custom_call.1} parent=1 // pred_region
      %1711 = dma.done [#allocation9], 1024
    $region37: #{tpu_custom_call.1} parent=1 // pred_fallthru
      _
    %1712 = vsyncpa [#allocation3], 1
    %1713 = vsyncpa [#allocation6], 1
    %1714 = vsyncpa [#allocation4], 1
    %1715 = vsyncpa [#allocation9], 1

</llo_original>
